<compile_context>
chip_gen: v7x
topology: tpu7x:2x2x1
jax: 0.10.0
libtpu: 0.0.40
codegen_flags: <defaults>
</compile_context>

<pallas_src>
import math

import jax
import jax.numpy as jnp
from jax import lax
from jax.experimental import pallas as pl
from jax.experimental.pallas import tpu as pltpu

EPS = 1e-5  # nn.GroupNorm default eps


def _gelu_tanh(x):
    # tanh-approximate GELU; the tanh lands on the EUP (otherwise idle slot).
    c = 0.7978845608028654  # sqrt(2/pi)
    return 0.5 * x * (1.0 + jnp.tanh(c * (x + 0.044715 * x * x * x)))


def _gelu_exact(x):
    # exact erf GELU (PyTorch nn.GELU default) -- used by the pure-JAX reference.
    return 0.5 * x * (1.0 + lax.erf(x * (1.0 / math.sqrt(2.0))))


def _make_kernel(Nb, C, H, W):
    HW = H * W
    inv_hwc = 1.0 / float(H * W * C)
    inv_hw = 1.0 / float(H * W)

    def kernel(x_ref, w_ref, v_ref, o_ref):
        # ---- unpack packed parameters once per grid step ----
        # w_ref: (5C, C) rows = [w1, wsca, w3, w4, w5] (each (Cout, Cin),
        #        GroupNorm affines / betas already folded in)
        w1 = w_ref[0 * C:1 * C, :]
        wsca = w_ref[1 * C:2 * C, :]
        w3 = w_ref[2 * C:3 * C, :]
        w4 = w_ref[3 * C:4 * C, :]
        w5 = w_ref[4 * C:5 * C, :]

        # v_ref: (C, 15) cols 0..8 = 3x3 depthwise taps (row-major), 9 = bdw,
        #        10 = b1', 11 = bsca, 12 = b3', 13 = b4', 14 = b5'
        vp = v_ref[...]
        bdw = vp[:, 9:10]
        b1 = vp[:, 10:11]
        bsca = vp[:, 11:12]
        b3 = vp[:, 12:13]
        b4 = vp[:, 13:14]
        b5 = vp[:, 14:15]

        # ---- boundary masks for the depthwise conv over the flat HW lane axis ----
        hw = lax.broadcasted_iota(jnp.int32, (1, HW), 1)
        col = hw % W
        up_ok = hw >= W                  # may read h-1
        down_ok = hw < (H - 1) * W       # may read h+1
        left_ok = col >= 1               # may read w-1
        right_ok = col <= (W - 2)        # may read w+1

        for s in range(Nb):
            x = x_ref[s].astype(jnp.float32)           # (C, HW)

            # -------- GroupNorm(1, C): stats only (affine folded into conv1) ----
            xc = x - jnp.sum(x) * inv_hwc
            var = jnp.sum(xc * xc) * inv_hwc
            xhat = xc * lax.rsqrt(var + EPS)

            # -------- conv1: 1x1 pointwise, (C,C) @ (C,HW) on the MXU ----------
            y = jnp.dot(w1, xhat, preferred_element_type=jnp.float32) + b1

            # -------- conv2: 3x3 depthwise via XLU rolls + boundary masks -------
            acc = y * vp[:, 4:5] + bdw                 # center tap (dh=0, dw=0)
            for dh in (-1, 0, 1):
                for dwo in (-1, 0, 1):
                    if dh == 0 and dwo == 0:
                        continue
                    k = (dh + 1) * 3 + (dwo + 1)
                    tap = vp[:, k:k + 1]               # (C, 1)
                    shift = (-(dh * W + dwo)) % HW
                    shifted = pltpu.roll(y, shift=shift, axis=1)
                    conds = []
                    if dh == -1:
                        conds.append(up_ok)
                    elif dh == 1:
                        conds.append(down_ok)
                    if dwo == -1:
                        conds.append(left_ok)
                    elif dwo == 1:
                        conds.append(right_ok)
                    m = conds[0]
                    for extra in conds[1:]:
                        m = jnp.logical_and(m, extra)
                    acc = acc + jnp.where(m, shifted, 0.0) * tap

            # -------- GELU (EUP tanh approximation) -----------------------------
            y = _gelu_tanh(acc)

            # -------- SCA: y * (wsca @ GAP(y) + bsca) ---------------------------
            gap = jnp.sum(y, axis=1, keepdims=True) * inv_hw        # (C, 1)
            att = jnp.dot(wsca, gap, preferred_element_type=jnp.float32) + bsca
            y = y * att

            # -------- conv3 (beta1 folded) + residual ---------------------------
            z = x + jnp.dot(w3, y, preferred_element_type=jnp.float32) + b3

            # -------- second half: GN2 -> conv4 -> GELU -> conv5 -> residual ----
            zc = z - jnp.sum(z) * inv_hwc
            var2 = jnp.sum(zc * zc) * inv_hwc
            zhat = zc * lax.rsqrt(var2 + EPS)
            u = jnp.dot(w4, zhat, preferred_element_type=jnp.float32) + b4
            u = _gelu_tanh(u)
            out = z + jnp.dot(w5, u, preferred_element_type=jnp.float32) + b5

            o_ref[s] = out.astype(o_ref.dtype)

    return kernel


def residual_block_naf_hoaf(x_nchw, p, *, samples_per_step=1):
    """x_nchw: (N, C, H, W) float32.  p: dict of parameters in PyTorch conventions."""
    N, C, H, W = x_nchw.shape
    HW = H * W
    Nb = samples_per_step
    assert N % Nb == 0, "samples_per_step must divide N"

    # No transpose: NCHW -> (N, C, H*W) is a free, contiguous reshape.
    x = x_nchw.reshape(N, C, HW)

    # ---- fold GroupNorm affines and betas into the 1x1 conv weights ----
    w1 = p['w1'] * p['gn1_w'][None, :]
    b1 = p['w1'] @ p['gn1_b'] + p['b1']
    w3 = p['beta1'][:, None] * p['w3']
    b3 = p['beta1'] * p['b3']
    w4 = p['w4'] * p['gn2_w'][None, :]
    b4 = p['w4'] @ p['gn2_b'] + p['b4']
    w5 = p['beta2'][:, None] * p['w5']
    b5 = p['beta2'] * p['b5']

    wpack = jnp.concatenate([w1, p['wsca'], w3, w4, w5], axis=0)       # (5C, C)
    vpack = jnp.concatenate(
        [p['wdw'].reshape(C, 9),                                       # taps 0..8
         p['bdw'][:, None],                                            # 9
         b1[:, None], p['bsca'][:, None], b3[:, None],                 # 10,11,12
         b4[:, None], b5[:, None]], axis=1).astype(jnp.float32)        # 13,14

    kernel = _make_kernel(Nb, C, H, W)

    out = pl.pallas_call(
        kernel,
        out_shape=jax.ShapeDtypeStruct((N, C, HW), x.dtype),
        grid=(N // Nb,),
        in_specs=[
            pl.BlockSpec((Nb, C, HW), lambda n: (n, 0, 0)),
            pl.BlockSpec((5 * C, C), lambda n: (0, 0)),
            pl.BlockSpec((C, 15), lambda n: (0, 0)),
        ],
        out_specs=pl.BlockSpec((Nb, C, HW), lambda n: (n, 0, 0)),
        compiler_params=pltpu.CompilerParams(dimension_semantics=("parallel",)),
    )(x, wpack.astype(jnp.float32), vpack)

    return out.reshape(N, C, H, W)


# ----------------- pure-JAX reference (NCHW, mirrors PyTorch exactly) -----------------
def reference(x, p):
    N, C, H, W = x.shape

    def gn(t, g, b):
        mu = jnp.mean(t, axis=(1, 2, 3), keepdims=True)
        var = jnp.mean((t - mu) ** 2, axis=(1, 2, 3), keepdims=True)
        return (t - mu) / jnp.sqrt(var + EPS) * g.reshape(1, C, 1, 1) + b.reshape(1, C, 1, 1)

    def pw(t, w, b):  # 1x1 conv, w: (Cout, Cin)
        return jnp.einsum('nchw,oc->nohw', t, w) + b.reshape(1, C, 1, 1)

    def dw(t, w, b):  # 3x3 depthwise, w: (C, 3, 3)
        tp = jnp.pad(t, ((0, 0), (0, 0), (1, 1), (1, 1)))
        out = jnp.zeros_like(t)
        for i in range(3):
            for j in range(3):
                out = out + tp[:, :, i:i + H, j:j + W] * w[:, i, j].reshape(1, C, 1, 1)
        return out + b.reshape(1, C, 1, 1)

    identity = x
    y = gn(x, p['gn1_w'], p['gn1_b'])
    y = pw(y, p['w1'], p['b1'])
    y = dw(y, p['wdw'], p['bdw'])
    y = _gelu_exact(y)
    gap = jnp.mean(y, axis=(2, 3), keepdims=True)
    att = jnp.einsum('ncij,oc->noij', gap, p['wsca']) + p['bsca'].reshape(1, C, 1, 1)
    y = y * att
    y = pw(y, p['w3'], p['b3'])
    y = identity + y * p['beta1'].reshape(1, C, 1, 1)
    identity = y
    y = gn(y, p['gn2_w'], p['gn2_b'])
    y = pw(y, p['w4'], p['b4'])
    y = _gelu_exact(y)
    y = pw(y, p['w5'], p['b5'])
    return identity + y * p['beta2'].reshape(1, C, 1, 1)


if __name__ == "__main__":
    N, C, H, W = 2, 32, 16, 16
    key = jax.random.PRNGKey(0)
    ks = jax.random.split(key, 20)

    s = 0.1  # small deterministic init scale
    params = {
        'gn1_w': 1.0 + s * jax.random.normal(ks[0], (C,), jnp.float32),
        'gn1_b': s * jax.random.normal(ks[1], (C,), jnp.float32),
        'w1':   s * jax.random.normal(ks[2], (C, C), jnp.float32),
        'b1':   s * jax.random.normal(ks[3], (C,), jnp.float32),
        'wdw':  s * jax.random.normal(ks[4], (C, 3, 3), jnp.float32),
        'bdw':  s * jax.random.normal(ks[5], (C,), jnp.float32),
        'wsca': s * jax.random.normal(ks[6], (C, C), jnp.float32),
        'bsca': s * jax.random.normal(ks[7], (C,), jnp.float32),
        'w3':   s * jax.random.normal(ks[8], (C, C), jnp.float32),
        'b3':   s * jax.random.normal(ks[9], (C,), jnp.float32),
        'beta1': jnp.ones((C,), jnp.float32),
        'gn2_w': 1.0 + s * jax.random.normal(ks[10], (C,), jnp.float32),
        'gn2_b': s * jax.random.normal(ks[11], (C,), jnp.float32),
        'w4':   s * jax.random.normal(ks[12], (C, C), jnp.float32),
        'b4':   s * jax.random.normal(ks[13], (C,), jnp.float32),
        'w5':   s * jax.random.normal(ks[14], (C, C), jnp.float32),
        'b5':   s * jax.random.normal(ks[15], (C,), jnp.float32),
        'beta2': jnp.ones((C,), jnp.float32),
    }

    x = jax.random.normal(ks[16], (N, C, H, W), jnp.float32)

    out = jax.block_until_ready(residual_block_naf_hoaf(x, params))
    ref = jax.block_until_ready(reference(x, params))

    assert out.shape == x.shape and out.dtype == x.dtype
    err = jnp.max(jnp.abs(out - ref))
    if not bool(err < 2e-3):
        raise AssertionError(f"mismatch vs reference, max abs err = {err}")
    print("KERNEL_OK")
</pallas_src>

<mosaic_0001>
module attributes {stable_mosaic.version = 11 : i64} {
  func.func @kernel(%arg0: i32, %arg1: memref<1x32x256xf32, #tpu.memory_space<vmem>>, %arg2: memref<160x32xf32, #tpu.memory_space<vmem>>, %arg3: memref<32x15xf32, #tpu.memory_space<vmem>>, %arg4: memref<1x32x256xf32, #tpu.memory_space<vmem>>) attributes {dimension_semantics = [#tpu.dimension_semantics<parallel>], iteration_bounds = array<i64: 2>, scalar_prefetch = 0 : i64, scratch_operands = 0 : i64, tpu.core_type = #tpu.core_type<tc>, window_params = [{transform_indices = @transform_0, window_bounds = array<i64: 1, 32, 256>}, {pipeline_mode = #tpu.pipeline_mode<synchronous>, transform_indices = @transform_1, window_bounds = array<i64: 160, 32>}, {pipeline_mode = #tpu.pipeline_mode<synchronous>, transform_indices = @transform_2, window_bounds = array<i64: 32, 15>}, {transform_indices = @transform_3, window_bounds = array<i64: 1, 32, 256>}]} {
    %c0 = arith.constant 0 : index
    %c0_0 = arith.constant 0 : index
    %0 = vector.load %arg2[%c0, %c0_0] : memref<160x32xf32, #tpu.memory_space<vmem>>, vector<32x32xf32>
    %c32 = arith.constant 32 : index
    %c0_1 = arith.constant 0 : index
    %1 = vector.load %arg2[%c32, %c0_1] : memref<160x32xf32, #tpu.memory_space<vmem>>, vector<32x32xf32>
    %c64 = arith.constant 64 : index
    %c0_2 = arith.constant 0 : index
    %2 = vector.load %arg2[%c64, %c0_2] : memref<160x32xf32, #tpu.memory_space<vmem>>, vector<32x32xf32>
    %c96 = arith.constant 96 : index
    %c0_3 = arith.constant 0 : index
    %3 = vector.load %arg2[%c96, %c0_3] : memref<160x32xf32, #tpu.memory_space<vmem>>, vector<32x32xf32>
    %c128 = arith.constant 128 : index
    %c0_4 = arith.constant 0 : index
    %4 = vector.load %arg2[%c128, %c0_4] : memref<160x32xf32, #tpu.memory_space<vmem>>, vector<32x32xf32>
    %c0_5 = arith.constant 0 : index
    %c0_6 = arith.constant 0 : index
    %5 = vector.load %arg3[%c0_5, %c0_6] : memref<32x15xf32, #tpu.memory_space<vmem>>, vector<32x15xf32>
    %6 = vector.extract_strided_slice %5 {offsets = [0, 9], sizes = [32, 1], strides = [1, 1]} : vector<32x15xf32> to vector<32x1xf32>
    %7 = vector.extract_strided_slice %5 {offsets = [0, 10], sizes = [32, 1], strides = [1, 1]} : vector<32x15xf32> to vector<32x1xf32>
    %8 = vector.extract_strided_slice %5 {offsets = [0, 11], sizes = [32, 1], strides = [1, 1]} : vector<32x15xf32> to vector<32x1xf32>
    %9 = vector.extract_strided_slice %5 {offsets = [0, 12], sizes = [32, 1], strides = [1, 1]} : vector<32x15xf32> to vector<32x1xf32>
    %10 = vector.extract_strided_slice %5 {offsets = [0, 13], sizes = [32, 1], strides = [1, 1]} : vector<32x15xf32> to vector<32x1xf32>
    %11 = vector.extract_strided_slice %5 {offsets = [0, 14], sizes = [32, 1], strides = [1, 1]} : vector<32x15xf32> to vector<32x1xf32>
    %12 = tpu.iota {dimensions = array<i32: 1>} : vector<1x256xi32>
    %c16_i32 = arith.constant 16 : i32
    %c0_i32 = arith.constant 0 : i32
    %13 = arith.cmpi eq, %c16_i32, %c0_i32 : i32
    %c1_i32 = arith.constant 1 : i32
    %14 = arith.select %13, %c1_i32, %c16_i32 : i32
    %15 = vector.broadcast %14 : i32 to vector<1x256xi32>
    %16 = arith.remsi %12, %15 : vector<1x256xi32>
    %c0_i32_7 = arith.constant 0 : i32
    %17 = vector.broadcast %c0_i32_7 : i32 to vector<1x256xi32>
    %18 = arith.cmpi ne, %16, %17 : vector<1x256xi32>
    %c0_i32_8 = arith.constant 0 : i32
    %19 = vector.broadcast %c0_i32_8 : i32 to vector<1x256xi32>
    %20 = arith.cmpi slt, %16, %19 : vector<1x256xi32>
    %c0_i32_9 = arith.constant 0 : i32
    %21 = arith.cmpi slt, %14, %c0_i32_9 : i32
    %22 = vector.broadcast %21 : i1 to vector<1x256xi1>
    %23 = vector.broadcast %22 : vector<1x256xi1> to vector<1x256xi1>
    %24 = arith.xori %20, %23 : vector<1x256xi1>
    %25 = arith.andi %24, %18 : vector<1x256xi1>
    %26 = vector.broadcast %14 : i32 to vector<1x256xi32>
    %27 = arith.addi %16, %26 : vector<1x256xi32>
    %28 = arith.select %25, %27, %16 : vector<1x256xi1>, vector<1x256xi32>
    %c16_i32_10 = arith.constant 16 : i32
    %29 = vector.broadcast %c16_i32_10 : i32 to vector<1x256xi32>
    %30 = arith.cmpi sge, %12, %29 : vector<1x256xi32>
    %c240_i32 = arith.constant 240 : i32
    %31 = vector.broadcast %c240_i32 : i32 to vector<1x256xi32>
    %32 = arith.cmpi slt, %12, %31 : vector<1x256xi32>
    %c1_i32_11 = arith.constant 1 : i32
    %33 = vector.broadcast %c1_i32_11 : i32 to vector<1x256xi32>
    %34 = arith.cmpi sge, %28, %33 : vector<1x256xi32>
    %c14_i32 = arith.constant 14 : i32
    %35 = vector.broadcast %c14_i32 : i32 to vector<1x256xi32>
    %36 = arith.cmpi sle, %28, %35 : vector<1x256xi32>
    %c0_12 = arith.constant 0 : index
    %c0_13 = arith.constant 0 : index
    %c0_14 = arith.constant 0 : index
    %37 = vector.load %arg1[%c0_12, %c0_13, %c0_14] : memref<1x32x256xf32, #tpu.memory_space<vmem>>, vector<1x32x256xf32>
    %38 = vector.shape_cast %37 : vector<1x32x256xf32> to vector<32x256xf32>
    %39 = vector.shape_cast %38 : vector<32x256xf32> to vector<1x32x256xf32>
    %cst = arith.constant dense<0.000000e+00> : vector<1xf32>
    %40 = vector.multi_reduction <add>, %39, %cst [1, 2] : vector<1x32x256xf32> to vector<1xf32>
    %41 = vector.shape_cast %40 : vector<1xf32> to vector<1x1x1xf32>
    %42 = vector.extract %41[0, 0, 0] : f32 from vector<1x1x1xf32>
    %cst_15 = arith.constant 1.22070313E-4 : f32
    %43 = arith.mulf %42, %cst_15 : f32
    %44 = vector.broadcast %43 : f32 to vector<32x256xf32>
    %45 = arith.subf %38, %44 : vector<32x256xf32>
    %46 = arith.mulf %45, %45 : vector<32x256xf32>
    %47 = vector.shape_cast %46 : vector<32x256xf32> to vector<1x32x256xf32>
    %cst_16 = arith.constant dense<0.000000e+00> : vector<1xf32>
    %48 = vector.multi_reduction <add>, %47, %cst_16 [1, 2] : vector<1x32x256xf32> to vector<1xf32>
    %49 = vector.shape_cast %48 : vector<1xf32> to vector<1x1x1xf32>
    %50 = vector.extract %49[0, 0, 0] : f32 from vector<1x1x1xf32>
    %cst_17 = arith.constant 1.22070313E-4 : f32
    %51 = arith.mulf %50, %cst_17 : f32
    %cst_18 = arith.constant 9.99999974E-6 : f32
    %52 = arith.addf %51, %cst_18 : f32
    %53 = math.rsqrt %52 : f32
    %54 = vector.broadcast %53 : f32 to vector<32x256xf32>
    %55 = arith.mulf %45, %54 : vector<32x256xf32>
    %cst_19 = arith.constant dense<0.000000e+00> : vector<32x256xf32>
    %56 = tpu.matmul %0, %55, %cst_19 {dimension_numbers = #tpu.dot_dimension_numbers<[1], [0], [0], [1], [0, 0, 1, 1], [], []>} : vector<32x32xf32>, vector<32x256xf32>, vector<32x256xf32> -> vector<32x256xf32>
    %57 = vector.broadcast %7 : vector<32x1xf32> to vector<32x256xf32>
    %58 = arith.addf %56, %57 : vector<32x256xf32>
    %59 = vector.extract_strided_slice %5 {offsets = [0, 4], sizes = [32, 1], strides = [1, 1]} : vector<32x15xf32> to vector<32x1xf32>
    %60 = vector.broadcast %59 : vector<32x1xf32> to vector<32x256xf32>
    %61 = arith.mulf %58, %60 : vector<32x256xf32>
    %62 = vector.broadcast %6 : vector<32x1xf32> to vector<32x256xf32>
    %63 = arith.addf %61, %62 : vector<32x256xf32>
    %64 = vector.extract_strided_slice %5 {offsets = [0, 0], sizes = [32, 1], strides = [1, 1]} : vector<32x15xf32> to vector<32x1xf32>
    %c17_i32 = arith.constant 17 : i32
    %65 = tpu.dynamic_rotate %58 by %c17_i32 dim 1 : vector<32x256xf32>, i32 -> vector<32x256xf32>
    %66 = arith.andi %30, %34 : vector<1x256xi1>
    %cst_20 = arith.constant 0.000000e+00 : f32
    %67 = vector.shape_cast %66 : vector<1x256xi1> to vector<1x256xi1>
    %68 = vector.broadcast %67 : vector<1x256xi1> to vector<32x256xi1>
    %69 = vector.broadcast %cst_20 : f32 to vector<32x256xf32>
    %70 = arith.select %68, %65, %69 : vector<32x256xi1>, vector<32x256xf32>
    %71 = vector.broadcast %64 : vector<32x1xf32> to vector<32x256xf32>
    %72 = arith.mulf %70, %71 : vector<32x256xf32>
    %73 = arith.addf %63, %72 : vector<32x256xf32>
    %74 = vector.extract_strided_slice %5 {offsets = [0, 1], sizes = [32, 1], strides = [1, 1]} : vector<32x15xf32> to vector<32x1xf32>
    %c16_i32_21 = arith.constant 16 : i32
    %75 = tpu.dynamic_rotate %58 by %c16_i32_21 dim 1 : vector<32x256xf32>, i32 -> vector<32x256xf32>
    %cst_22 = arith.constant 0.000000e+00 : f32
    %76 = vector.shape_cast %30 : vector<1x256xi1> to vector<1x256xi1>
    %77 = vector.broadcast %76 : vector<1x256xi1> to vector<32x256xi1>
    %78 = vector.broadcast %cst_22 : f32 to vector<32x256xf32>
    %79 = arith.select %77, %75, %78 : vector<32x256xi1>, vector<32x256xf32>
    %80 = vector.broadcast %74 : vector<32x1xf32> to vector<32x256xf32>
    %81 = arith.mulf %79, %80 : vector<32x256xf32>
    %82 = arith.addf %73, %81 : vector<32x256xf32>
    %83 = vector.extract_strided_slice %5 {offsets = [0, 2], sizes = [32, 1], strides = [1, 1]} : vector<32x15xf32> to vector<32x1xf32>
    %c15_i32 = arith.constant 15 : i32
    %84 = tpu.dynamic_rotate %58 by %c15_i32 dim 1 : vector<32x256xf32>, i32 -> vector<32x256xf32>
    %85 = arith.andi %30, %36 : vector<1x256xi1>
    %cst_23 = arith.constant 0.000000e+00 : f32
    %86 = vector.shape_cast %85 : vector<1x256xi1> to vector<1x256xi1>
    %87 = vector.broadcast %86 : vector<1x256xi1> to vector<32x256xi1>
    %88 = vector.broadcast %cst_23 : f32 to vector<32x256xf32>
    %89 = arith.select %87, %84, %88 : vector<32x256xi1>, vector<32x256xf32>
    %90 = vector.broadcast %83 : vector<32x1xf32> to vector<32x256xf32>
    %91 = arith.mulf %89, %90 : vector<32x256xf32>
    %92 = arith.addf %82, %91 : vector<32x256xf32>
    %93 = vector.extract_strided_slice %5 {offsets = [0, 3], sizes = [32, 1], strides = [1, 1]} : vector<32x15xf32> to vector<32x1xf32>
    %c1_i32_24 = arith.constant 1 : i32
    %94 = tpu.dynamic_rotate %58 by %c1_i32_24 dim 1 : vector<32x256xf32>, i32 -> vector<32x256xf32>
    %cst_25 = arith.constant 0.000000e+00 : f32
    %95 = vector.shape_cast %34 : vector<1x256xi1> to vector<1x256xi1>
    %96 = vector.broadcast %95 : vector<1x256xi1> to vector<32x256xi1>
    %97 = vector.broadcast %cst_25 : f32 to vector<32x256xf32>
    %98 = arith.select %96, %94, %97 : vector<32x256xi1>, vector<32x256xf32>
    %99 = vector.broadcast %93 : vector<32x1xf32> to vector<32x256xf32>
    %100 = arith.mulf %98, %99 : vector<32x256xf32>
    %101 = arith.addf %92, %100 : vector<32x256xf32>
    %102 = vector.extract_strided_slice %5 {offsets = [0, 5], sizes = [32, 1], strides = [1, 1]} : vector<32x15xf32> to vector<32x1xf32>
    %c255_i32 = arith.constant 255 : i32
    %103 = tpu.dynamic_rotate %58 by %c255_i32 dim 1 : vector<32x256xf32>, i32 -> vector<32x256xf32>
    %cst_26 = arith.constant 0.000000e+00 : f32
    %104 = vector.shape_cast %36 : vector<1x256xi1> to vector<1x256xi1>
    %105 = vector.broadcast %104 : vector<1x256xi1> to vector<32x256xi1>
    %106 = vector.broadcast %cst_26 : f32 to vector<32x256xf32>
    %107 = arith.select %105, %103, %106 : vector<32x256xi1>, vector<32x256xf32>
    %108 = vector.broadcast %102 : vector<32x1xf32> to vector<32x256xf32>
    %109 = arith.mulf %107, %108 : vector<32x256xf32>
    %110 = arith.addf %101, %109 : vector<32x256xf32>
    %111 = vector.extract_strided_slice %5 {offsets = [0, 6], sizes = [32, 1], strides = [1, 1]} : vector<32x15xf32> to vector<32x1xf32>
    %c241_i32 = arith.constant 241 : i32
    %112 = tpu.dynamic_rotate %58 by %c241_i32 dim 1 : vector<32x256xf32>, i32 -> vector<32x256xf32>
    %113 = arith.andi %32, %34 : vector<1x256xi1>
    %cst_27 = arith.constant 0.000000e+00 : f32
    %114 = vector.shape_cast %113 : vector<1x256xi1> to vector<1x256xi1>
    %115 = vector.broadcast %114 : vector<1x256xi1> to vector<32x256xi1>
    %116 = vector.broadcast %cst_27 : f32 to vector<32x256xf32>
    %117 = arith.select %115, %112, %116 : vector<32x256xi1>, vector<32x256xf32>
    %118 = vector.broadcast %111 : vector<32x1xf32> to vector<32x256xf32>
    %119 = arith.mulf %117, %118 : vector<32x256xf32>
    %120 = arith.addf %110, %119 : vector<32x256xf32>
    %121 = vector.extract_strided_slice %5 {offsets = [0, 7], sizes = [32, 1], strides = [1, 1]} : vector<32x15xf32> to vector<32x1xf32>
    %c240_i32_28 = arith.constant 240 : i32
    %122 = tpu.dynamic_rotate %58 by %c240_i32_28 dim 1 : vector<32x256xf32>, i32 -> vector<32x256xf32>
    %cst_29 = arith.constant 0.000000e+00 : f32
    %123 = vector.shape_cast %32 : vector<1x256xi1> to vector<1x256xi1>
    %124 = vector.broadcast %123 : vector<1x256xi1> to vector<32x256xi1>
    %125 = vector.broadcast %cst_29 : f32 to vector<32x256xf32>
    %126 = arith.select %124, %122, %125 : vector<32x256xi1>, vector<32x256xf32>
    %127 = vector.broadcast %121 : vector<32x1xf32> to vector<32x256xf32>
    %128 = arith.mulf %126, %127 : vector<32x256xf32>
    %129 = arith.addf %120, %128 : vector<32x256xf32>
    %130 = vector.extract_strided_slice %5 {offsets = [0, 8], sizes = [32, 1], strides = [1, 1]} : vector<32x15xf32> to vector<32x1xf32>
    %c239_i32 = arith.constant 239 : i32
    %131 = tpu.dynamic_rotate %58 by %c239_i32 dim 1 : vector<32x256xf32>, i32 -> vector<32x256xf32>
    %132 = arith.andi %32, %36 : vector<1x256xi1>
    %cst_30 = arith.constant 0.000000e+00 : f32
    %133 = vector.shape_cast %132 : vector<1x256xi1> to vector<1x256xi1>
    %134 = vector.broadcast %133 : vector<1x256xi1> to vector<32x256xi1>
    %135 = vector.broadcast %cst_30 : f32 to vector<32x256xf32>
    %136 = arith.select %134, %131, %135 : vector<32x256xi1>, vector<32x256xf32>
    %137 = vector.broadcast %130 : vector<32x1xf32> to vector<32x256xf32>
    %138 = arith.mulf %136, %137 : vector<32x256xf32>
    %139 = arith.addf %129, %138 : vector<32x256xf32>
    %cst_31 = arith.constant 5.000000e-01 : f32
    %140 = vector.broadcast %cst_31 : f32 to vector<32x256xf32>
    %141 = arith.mulf %140, %139 : vector<32x256xf32>
    %cst_32 = arith.constant 4.471500e-02 : f32
    %142 = vector.broadcast %cst_32 : f32 to vector<32x256xf32>
    %143 = arith.mulf %142, %139 : vector<32x256xf32>
    %144 = arith.mulf %143, %139 : vector<32x256xf32>
    %145 = arith.mulf %144, %139 : vector<32x256xf32>
    %146 = arith.addf %139, %145 : vector<32x256xf32>
    %cst_33 = arith.constant 0.797884583 : f32
    %147 = vector.broadcast %cst_33 : f32 to vector<32x256xf32>
    %148 = arith.mulf %147, %146 : vector<32x256xf32>
    %149 = math.tanh %148 : vector<32x256xf32>
    %cst_34 = arith.constant 1.000000e+00 : f32
    %150 = vector.broadcast %cst_34 : f32 to vector<32x256xf32>
    %151 = arith.addf %150, %149 : vector<32x256xf32>
    %152 = arith.mulf %141, %151 : vector<32x256xf32>
    %cst_35 = arith.constant dense<0.000000e+00> : vector<32xf32>
    %153 = vector.multi_reduction <add>, %152, %cst_35 [1] : vector<32x256xf32> to vector<32xf32>
    %154 = vector.shape_cast %153 : vector<32xf32> to vector<32x1xf32>
    %cst_36 = arith.constant 3.906250e-03 : f32
    %155 = vector.broadcast %cst_36 : f32 to vector<32x1xf32>
    %156 = arith.mulf %154, %155 : vector<32x1xf32>
    %cst_37 = arith.constant dense<0.000000e+00> : vector<32x1xf32>
    %157 = tpu.matmul %1, %156, %cst_37 {dimension_numbers = #tpu.dot_dimension_numbers<[1], [0], [0], [1], [0, 0, 1, 1], [], []>} : vector<32x32xf32>, vector<32x1xf32>, vector<32x1xf32> -> vector<32x1xf32>
    %158 = arith.addf %157, %8 : vector<32x1xf32>
    %159 = vector.broadcast %158 : vector<32x1xf32> to vector<32x256xf32>
    %160 = arith.mulf %152, %159 : vector<32x256xf32>
    %cst_38 = arith.constant dense<0.000000e+00> : vector<32x256xf32>
    %161 = tpu.matmul %2, %160, %cst_38 {dimension_numbers = #tpu.dot_dimension_numbers<[1], [0], [0], [1], [0, 0, 1, 1], [], []>} : vector<32x32xf32>, vector<32x256xf32>, vector<32x256xf32> -> vector<32x256xf32>
    %162 = arith.addf %38, %161 : vector<32x256xf32>
    %163 = vector.broadcast %9 : vector<32x1xf32> to vector<32x256xf32>
    %164 = arith.addf %162, %163 : vector<32x256xf32>
    %165 = vector.shape_cast %164 : vector<32x256xf32> to vector<1x32x256xf32>
    %cst_39 = arith.constant dense<0.000000e+00> : vector<1xf32>
    %166 = vector.multi_reduction <add>, %165, %cst_39 [1, 2] : vector<1x32x256xf32> to vector<1xf32>
    %167 = vector.shape_cast %166 : vector<1xf32> to vector<1x1x1xf32>
    %168 = vector.extract %167[0, 0, 0] : f32 from vector<1x1x1xf32>
    %cst_40 = arith.constant 1.22070313E-4 : f32
    %169 = arith.mulf %168, %cst_40 : f32
    %170 = vector.broadcast %169 : f32 to vector<32x256xf32>
    %171 = arith.subf %164, %170 : vector<32x256xf32>
    %172 = arith.mulf %171, %171 : vector<32x256xf32>
    %173 = vector.shape_cast %172 : vector<32x256xf32> to vector<1x32x256xf32>
    %cst_41 = arith.constant dense<0.000000e+00> : vector<1xf32>
    %174 = vector.multi_reduction <add>, %173, %cst_41 [1, 2] : vector<1x32x256xf32> to vector<1xf32>
    %175 = vector.shape_cast %174 : vector<1xf32> to vector<1x1x1xf32>
    %176 = vector.extract %175[0, 0, 0] : f32 from vector<1x1x1xf32>
    %cst_42 = arith.constant 1.22070313E-4 : f32
    %177 = arith.mulf %176, %cst_42 : f32
    %cst_43 = arith.constant 9.99999974E-6 : f32
    %178 = arith.addf %177, %cst_43 : f32
    %179 = math.rsqrt %178 : f32
    %180 = vector.broadcast %179 : f32 to vector<32x256xf32>
    %181 = arith.mulf %171, %180 : vector<32x256xf32>
    %cst_44 = arith.constant dense<0.000000e+00> : vector<32x256xf32>
    %182 = tpu.matmul %3, %181, %cst_44 {dimension_numbers = #tpu.dot_dimension_numbers<[1], [0], [0], [1], [0, 0, 1, 1], [], []>} : vector<32x32xf32>, vector<32x256xf32>, vector<32x256xf32> -> vector<32x256xf32>
    %183 = vector.broadcast %10 : vector<32x1xf32> to vector<32x256xf32>
    %184 = arith.addf %182, %183 : vector<32x256xf32>
    %cst_45 = arith.constant 5.000000e-01 : f32
    %185 = vector.broadcast %cst_45 : f32 to vector<32x256xf32>
    %186 = arith.mulf %185, %184 : vector<32x256xf32>
    %cst_46 = arith.constant 4.471500e-02 : f32
    %187 = vector.broadcast %cst_46 : f32 to vector<32x256xf32>
    %188 = arith.mulf %187, %184 : vector<32x256xf32>
    %189 = arith.mulf %188, %184 : vector<32x256xf32>
    %190 = arith.mulf %189, %184 : vector<32x256xf32>
    %191 = arith.addf %184, %190 : vector<32x256xf32>
    %cst_47 = arith.constant 0.797884583 : f32
    %192 = vector.broadcast %cst_47 : f32 to vector<32x256xf32>
    %193 = arith.mulf %192, %191 : vector<32x256xf32>
    %194 = math.tanh %193 : vector<32x256xf32>
    %cst_48 = arith.constant 1.000000e+00 : f32
    %195 = vector.broadcast %cst_48 : f32 to vector<32x256xf32>
    %196 = arith.addf %195, %194 : vector<32x256xf32>
    %197 = arith.mulf %186, %196 : vector<32x256xf32>
    %cst_49 = arith.constant dense<0.000000e+00> : vector<32x256xf32>
    %198 = tpu.matmul %4, %197, %cst_49 {dimension_numbers = #tpu.dot_dimension_numbers<[1], [0], [0], [1], [0, 0, 1, 1], [], []>} : vector<32x32xf32>, vector<32x256xf32>, vector<32x256xf32> -> vector<32x256xf32>
    %199 = arith.addf %164, %198 : vector<32x256xf32>
    %200 = vector.broadcast %11 : vector<32x1xf32> to vector<32x256xf32>
    %201 = arith.addf %199, %200 : vector<32x256xf32>
    %c0_50 = arith.constant 0 : index
    %c0_51 = arith.constant 0 : index
    %c0_52 = arith.constant 0 : index
    %202 = vector.load %arg4[%c0_50, %c0_51, %c0_52] : memref<1x32x256xf32, #tpu.memory_space<vmem>>, vector<1x32x256xf32>
    %203 = vector.shape_cast %202 : vector<1x32x256xf32> to vector<32x256xf32>
    %204 = vector.shape_cast %201 : vector<32x256xf32> to vector<1x32x256xf32>
    tpu.vector_store %arg4[%c0_50, %c0_51, %c0_52], %204 {strides = array<i32>} : memref<1x32x256xf32, #tpu.memory_space<vmem>>, vector<1x32x256xf32>,
    return
  }
  func.func @transform_0(%arg0: i32) -> (i32, i32, i32) {
    %c0_i32 = arith.constant 0 : i32
    %c0_i32_0 = arith.constant 0 : i32
    %c0_i32_1 = arith.constant 0 : i32
    return %arg0, %c0_i32, %c0_i32_0 : i32, i32, i32
  }
  func.func @transform_1(%arg0: i32) -> (i32, i32) {
    %c0_i32 = arith.constant 0 : i32
    %c0_i32_0 = arith.constant 0 : i32
    %c0_i32_1 = arith.constant 0 : i32
    return %c0_i32, %c0_i32_0 : i32, i32
  }
  func.func @transform_2(%arg0: i32) -> (i32, i32) {
    %c0_i32 = arith.constant 0 : i32
    %c0_i32_0 = arith.constant 0 : i32
    %c0_i32_1 = arith.constant 0 : i32
    return %c0_i32, %c0_i32_0 : i32, i32
  }
  func.func @transform_3(%arg0: i32) -> (i32, i32, i32) {
    %c0_i32 = arith.constant 0 : i32
    %c0_i32_0 = arith.constant 0 : i32
    %c0_i32_1 = arith.constant 0 : i32
    return %arg0, %c0_i32, %c0_i32_0 : i32, i32, i32
  }
}

</mosaic_0001>

<llo_original>
// kernel: tpu_custom_call.1
$region0: #{tpu_custom_call.1}
  #allocation0 [shape = 'u32[]', space=smem, size = 0x4, offset = 0x4, fixed_abs, tag = 'smem constant byte address 0x4 - core index']
  #allocation1 [shape = 'u32[144,128]{1,0:T(1,128)}', space=vmem, size = 0x12000, scoped, tag = 'internal scratch']
  %s0 = inlined_call_operand.vmem [shape: f32[2,32,256], index: 0, kind: input, shape index: {}]
  %s1 = inlined_call_operand.vmem [shape: f32[160,32], index: 1, kind: input, shape index: {}]
  %s2 = inlined_call_operand.vmem [shape: f32[32,15], index: 2, kind: input, shape index: {}]
  %s3 = inlined_call_operand.hbm [shape: f32[2,32,256], index: 3, kind: output, shape index: {}]
  %s4 = sld [smem:[#allocation0]]
  $region45: #{tpu_custom_call.1} parent=0
    _
  %s6 = ssub.s32 1, %s4
  %s7 = scalar_select 0, %s6, %s4
  $region1: #{tpu_custom_call.1} parent=0
    #allocation2 [shape = 'u8[65536]{0}', space=vmem, size = 0x10000, scoped, tag = 'output window, operand 0']
    #allocation3 [shape = 's32[2]{0}', space=sflag, size = 0x8, scoped, tag = 'scoped memory for tpu_custom_call.1']
    %8 = vsyncpa [#allocation3], 0
    %s9 = scalar_lea.sflag [#allocation3], 1
    %10 = vsyncpa %s9, 0
    loop: start=0, step=1, limit=4
    $region2: #{tpu_custom_call.1} parent=1 // loop_pre_header
      _
    $region3: #{tpu_custom_call.1} parent=1 // loop_header
      %s12 = sphi 0, %s16
      %p13 = scmp.ge.s32.totalorder %s12, 4
      %s22 = sphi 0, %s24
      %s25 = sphi 0, %s22
      %s26 = sphi 0, %s25
      %s42 = sphi 0, %s26
      %s46 = sphi 0, %s46
      %s48 = sphi 0, %s46
      %s49 = sphi 0, %s48
      %s63 = sphi 0, %s49
      %s67 = sphi 0, %s67
      %s69 = sphi 0, %s67
      %s70 = sphi 0, %s69
      %s84 = sphi 0, %s70
      %s90 = sphi 0, %s92
      %s93 = sphi 0, %s90
      %s94 = sphi 0, %s93
      %s110 = sphi 0, %s94
    $region4: #{tpu_custom_call.1} parent=1 // loop_header_branch
      %15 = sbr.rel (%p13) target = $region8
    $region5: #{tpu_custom_call.1} parent=1 // loop_body
      %s17 = ssub.s32 %s12, 1
      %s18 = ssub.s32 %s12, 2
      %s19 = sadd.s32 %s12, 1
      %s20 = ssub.s32 %s12, %s19
      %p21 = scmp.eq.s32.totalorder %s20, 0
      %s23 = sadd.s32 %s22, 1
      %s24 = scalar_select %p21, %s22, %s23
      %p27 = pneg %p21
      %p28 = scmp.eq.s32.totalorder %s12, 1
      %p29 = por %p27, %p28
      %p30 = scmp.ne.s32.totalorder %s22, %s25
      %p31 = scmp.eq.s32.totalorder %s12, 0
      %p32 = por %p30, %p31
      %p33 = scmp.ne.s32.totalorder %s22, %s25
      %p34 = scmp.eq.s32.totalorder %s17, 1
      %p35 = por %p33, %p34
      %p36 = scmp.ne.s32.totalorder %s25, %s26
      %p37 = scmp.eq.s32.totalorder %s17, 0
      %p38 = por %p36, %p37
      %p39 = scmp.ne.s32.totalorder %s25, %s26
      %p40 = scmp.eq.s32.totalorder %s18, 1
      %p41 = por %p39, %p40
      %p43 = scmp.ne.s32.totalorder %s26, %s42
      %p44 = scmp.eq.s32.totalorder %s18, 0
      %p45 = por %p43, %p44
      %s47 = sadd.s32 %s46, 1
      %p50 = scmp.eq.s32.totalorder %s12, 1
      %p51 = scmp.ne.s32.totalorder %s46, %s48
      %p52 = scmp.eq.s32.totalorder %s12, 0
      %p53 = por %p51, %p52
      %p54 = scmp.ne.s32.totalorder %s46, %s48
      %p55 = scmp.eq.s32.totalorder %s17, 1
      %p56 = por %p54, %p55
      %p57 = scmp.ne.s32.totalorder %s48, %s49
      %p58 = scmp.eq.s32.totalorder %s17, 0
      %p59 = por %p57, %p58
      %p60 = scmp.ne.s32.totalorder %s48, %s49
      %p61 = scmp.eq.s32.totalorder %s18, 1
      %p62 = por %p60, %p61
      %p64 = scmp.ne.s32.totalorder %s49, %s63
      %p65 = scmp.eq.s32.totalorder %s18, 0
      %p66 = por %p64, %p65
      %s68 = sadd.s32 %s67, 1
      %p71 = scmp.eq.s32.totalorder %s12, 1
      %p72 = scmp.ne.s32.totalorder %s67, %s69
      %p73 = scmp.eq.s32.totalorder %s12, 0
      %p74 = por %p72, %p73
      %p75 = scmp.ne.s32.totalorder %s67, %s69
      %p76 = scmp.eq.s32.totalorder %s17, 1
      %p77 = por %p75, %p76
      %p78 = scmp.ne.s32.totalorder %s69, %s70
      %p79 = scmp.eq.s32.totalorder %s17, 0
      %p80 = por %p78, %p79
      %p81 = scmp.ne.s32.totalorder %s69, %s70
      %p82 = scmp.eq.s32.totalorder %s18, 1
      %p83 = por %p81, %p82
      %p85 = scmp.ne.s32.totalorder %s70, %s84
      %p86 = scmp.eq.s32.totalorder %s18, 0
      %p87 = por %p85, %p86
      %s88 = ssub.s32 %s12, %s19
      %p89 = scmp.eq.s32.totalorder %s88, 0
      %s91 = sadd.s32 %s90, 1
      %s92 = scalar_select %p89, %s90, %s91
      %p95 = pneg %p89
      %p96 = scmp.eq.s32.totalorder %s12, 1
      %p97 = por %p95, %p96
      %p98 = scmp.ne.s32.totalorder %s90, %s93
      %p99 = scmp.eq.s32.totalorder %s12, 0
      %p100 = por %p98, %p99
      %p101 = scmp.ne.s32.totalorder %s90, %s93
      %p102 = scmp.eq.s32.totalorder %s17, 1
      %p103 = por %p101, %p102
      %p104 = scmp.ne.s32.totalorder %s93, %s94
      %p105 = scmp.eq.s32.totalorder %s17, 0
      %p106 = por %p104, %p105
      %p107 = scmp.ne.s32.totalorder %s93, %s94
      %p108 = scmp.eq.s32.totalorder %s18, 1
      %p109 = por %p107, %p108
      %p111 = scmp.ne.s32.totalorder %s94, %s110
      %p112 = scmp.eq.s32.totalorder %s18, 0
      %p113 = por %p111, %p112
      %p114 = scmp.le.s32.totalorder 1, %s12
      %p115 = scmp.lt.s32.totalorder %s12, 3
      %p116 = pnand %p114, %p115
      %p117 = pneg %p116
      // Predicated region
      $region9: #{tpu_custom_call.1} parent=5 // pred_check
        _
      $region10: #{tpu_custom_call.1} parent=5 // pred_check_branch
        %119 = sbr.rel (%p116) target = $region12
      $region11: #{tpu_custom_call.1} parent=5 // pred_region
        %s120 = ssub.s32 %s12, 1
        // Predicated region
        $region13: #{tpu_custom_call.1} parent=11 // pred_check
          %p121 = pneg %p59
        $region14: #{tpu_custom_call.1} parent=11 // pred_check_branch
          %123 = sbr.rel (%p121) target = $region16
        $region15: #{tpu_custom_call.1} parent=11 // pred_region
          _
        $region16: #{tpu_custom_call.1} parent=11 // pred_fallthru
          _
        // Predicated region
        $region17: #{tpu_custom_call.1} parent=11 // pred_check
          %p124 = pneg %p80
        $region18: #{tpu_custom_call.1} parent=11 // pred_check_branch
          %126 = sbr.rel (%p124) target = $region20
        $region19: #{tpu_custom_call.1} parent=11 // pred_region
          _
        $region20: #{tpu_custom_call.1} parent=11 // pred_fallthru
          _
      $region12: #{tpu_custom_call.1} parent=5 // pred_fallthru
        _
      %p127 = scmp.lt.s32.totalorder %s12, 2
      // Predicated region
      $region21: #{tpu_custom_call.1} parent=5 // pred_check
        %p128 = pneg %p127
      $region22: #{tpu_custom_call.1} parent=5 // pred_check_branch
        %130 = sbr.rel (%p128) target = $region24
      $region23: #{tpu_custom_call.1} parent=5 // pred_region
        // Predicated region
        $region25: #{tpu_custom_call.1} parent=23 // pred_check
          %p131 = pneg %p32
        $region26: #{tpu_custom_call.1} parent=23 // pred_check_branch
          %133 = sbr.rel (%p131) target = $region28
        $region27: #{tpu_custom_call.1} parent=23 // pred_region
          %p134 = scmp.lt.s32.totalorder %s12, 1
          %s135 = scalar_select %p134, %s12, 1
          %s136 = smul.addr %s135, 8
          %s137 = smul.addr %s136, 8
          %s138 = scalar_lea.vmem %s0, %s137
        $region28: #{tpu_custom_call.1} parent=23 // pred_fallthru
          _
      $region24: #{tpu_custom_call.1} parent=5 // pred_fallthru
        _
      %p139 = scmp.le.s32.totalorder 1, %s12
      %p140 = scmp.lt.s32.totalorder %s12, 3
      %p141 = pnand %p139, %p140
      %p142 = pneg %p141
      // Predicated region
      $region29: #{tpu_custom_call.1} parent=5 // pred_check
        _
      $region30: #{tpu_custom_call.1} parent=5 // pred_check_branch
        %144 = sbr.rel (%p141) target = $region32
      $region31: #{tpu_custom_call.1} parent=5 // pred_region
        %s145 = ssub.s32 %s12, 1
        %p146 = scmp.lt.s32.totalorder %s17, 1
        %s147 = scalar_select %p146, %s17, 1
        %s148 = smul.addr %s147, 8
        %s149 = smul.addr %s148, 8
        %s150 = scalar_lea.vmem %s0, %s149
        %p151 = pneg %p38
        %p152 = pneg %p35
        %p153 = pneg %p59
        %p154 = pneg %p56
        %p155 = pneg %p80
        %p156 = pneg %p77
        %p157 = pneg %p106
        %p158 = pneg %p103
        %s159 = sand.u32 %s93, 1
        %s160 = scalar_lea.sflag [#allocation3], %s159
        %s161 = sand.u32 %s93, 1
        %s162 = smul.addr %s161, 64
        %s163 = scalar_lea.vmem [#allocation2], %s162
        %p164 = scmp.lt.s32.totalorder %s17, 1
        %s165 = scalar_select %p164, %s17, 1
        %s166 = smul.addr %s165, 8
        %s167 = smul.addr %s166, 8
        %s168 = scalar_lea.vmem %s0, %s167
        %v169 = vld [vmem:[%s1] sm:$0xff]
        %v170 = vld [vmem:[%s1 + $0x8] sm:$0xff]
        %v171 = vld [vmem:[%s1 + $0x10] sm:$0xff]
        %v172 = vld [vmem:[%s1 + $0x18] sm:$0xff]
        %v173 = vld [vmem:[%s1 + $0x20] sm:$0xff]
        %v174 = vld [vmem:[%s1 + $0x28] sm:$0xff]
        %v175 = vld [vmem:[%s1 + $0x30] sm:$0xff]
        %v176 = vld [vmem:[%s1 + $0x38] sm:$0xff]
        %v177 = vld [vmem:[%s1 + $0x40] sm:$0xff]
        %v178 = vld [vmem:[%s1 + $0x48] sm:$0xff]
        %v179 = vld [vmem:[%s1 + $0x50] sm:$0xff]
        %v180 = vld [vmem:[%s1 + $0x58] sm:$0xff]
        %v181 = vld [vmem:[%s1 + $0x60] sm:$0xff]
        %v182 = vld [vmem:[%s1 + $0x68] sm:$0xff]
        %v183 = vld [vmem:[%s1 + $0x70] sm:$0xff]
        %v184 = vld [vmem:[%s1 + $0x78] sm:$0xff]
        %v185 = vld [vmem:[%s1 + $0x80] sm:$0xff]
        %v186 = vld [vmem:[%s1 + $0x88] sm:$0xff]
        %v187 = vld [vmem:[%s1 + $0x90] sm:$0xff]
        %v188 = vld [vmem:[%s1 + $0x98] sm:$0xff]
        %v189 = vld [vmem:[%s2] sm:$0xff]
        %v190 = vld [vmem:[%s2 + $0x8] sm:$0xff]
        %v191 = vld [vmem:[%s2 + $0x10] sm:$0xff]
        %v192 = vld [vmem:[%s2 + $0x18] sm:$0xff]
        %v193 = vlaneseq
        %v194 = vand.u32 %v193, 127
        %v195 = vadd.s32 %v194, 128
        %vm196 = vcmp.lt.s32.totalorder %v194, 0
        %v197 = vsub.s32 0, %v194
        %v198 = vsel %vm196, %v197, %v194
        %v199 = vshrl.u32 %v198, 4
        %v200 = vand.u32 %v198, 15
        %v201 = vsub.s32 0, %v200
        %v202 = vsel %vm196, %v201, %v200
        %vm203 = vcmp.lt.s32.totalorder %v195, 0
        %v204 = vsub.s32 0, %v195
        %v205 = vsel %vm203, %v204, %v195
        %v206 = vshrl.u32 %v205, 4
        %v207 = vand.u32 %v205, 15
        %v208 = vsub.s32 0, %v207
        %v209 = vsel %vm203, %v208, %v207
        %vm210 = vcmp.ne.s32.totalorder %v202, 0
        %vm211 = vcmp.ne.s32.totalorder %v209, 0
        %vm212 = vcmp.lt.s32.totalorder %v202, 0
        %vm213 = vcmp.lt.s32.totalorder %v209, 0
        %vm214 = vmand %vm212, %vm210
        %vm215 = vmand %vm213, %vm211
        %v216 = vadd.s32 %v202, 16
        %v217 = vadd.s32 %v209, 16
        %v218 = vsel %vm214, %v216, %v202
        %v219 = vsel %vm215, %v217, %v209
        %vm220 = vcmp.ge.s32.totalorder %v194, 16
        %vm221 = vcmp.ge.s32.totalorder %v195, 16
        %vm222 = vcmp.lt.s32.totalorder %v194, 240
        %vm223 = vcmp.lt.s32.totalorder %v195, 240
        %vm224 = vcmp.ge.s32.totalorder %v218, 1
        %vm225 = vcmp.ge.s32.totalorder %v219, 1
        %vm226 = vcmp.le.s32.totalorder %v218, 14
        %vm227 = vcmp.le.s32.totalorder %v219, 14
        %v228 = vld [vmem:[%s168] sm:$0xff]
        %v229 = vld [vmem:[%s168 + $0x8] sm:$0xff]
        %v230 = vld [vmem:[%s168 + $0x10] sm:$0xff]
        %v231 = vld [vmem:[%s168 + $0x18] sm:$0xff]
        %v232 = vld [vmem:[%s168 + $0x20] sm:$0xff]
        %v233 = vld [vmem:[%s168 + $0x28] sm:$0xff]
        %v234 = vld [vmem:[%s168 + $0x30] sm:$0xff]
        %v235 = vld [vmem:[%s168 + $0x38] sm:$0xff]
        %v236 = vadd.f32 %v228, %v229
        %v237 = vadd.f32 %v236, %v230
        %v238 = vadd.f32 %v237, %v231
        %v239 = vadd.f32 %v238, %v232
        %v240 = vadd.f32 %v239, %v233
        %v241 = vadd.f32 %v240, %v234
        %v242 = vadd.f32 %v241, %v235
        %243 = vadd.xlane.f32.xlu0 %v242
        %v244 = vpop.xlane.xlu0 %243
        %v245 = vrot.slane %v244, 4
        %v246 = vadd.f32 %v244, %v245
        %v247 = vrot.slane %v246, 2
        %v248 = vadd.f32 %v246, %v247
        %v249 = vrot.slane %v248, 1
        %v250 = vadd.f32 %v248, %v249
        %s251 = vtos %v250
        %s252 = smul.f32 %s251, 0.00012207031
        %v253 = vstv %s252
        %v254 = vsub.f32 %v228, %v253
        %v255 = vsub.f32 %v229, %v253
        %v256 = vsub.f32 %v230, %v253
        %v257 = vsub.f32 %v231, %v253
        %v258 = vsub.f32 %v232, %v253
        %v259 = vsub.f32 %v233, %v253
        %v260 = vsub.f32 %v234, %v253
        %v261 = vsub.f32 %v235, %v253
        %v262 = vmul.f32 %v254, %v254
        %v263 = vmul.f32 %v255, %v255
        %v264 = vmul.f32 %v256, %v256
        %v265 = vmul.f32 %v257, %v257
        %v266 = vmul.f32 %v258, %v258
        %v267 = vmul.f32 %v259, %v259
        %v268 = vmul.f32 %v260, %v260
        %v269 = vmul.f32 %v261, %v261
        %v270 = vadd.f32 %v262, %v263
        %v271 = vadd.f32 %v270, %v264
        %v272 = vadd.f32 %v271, %v265
        %v273 = vadd.f32 %v272, %v266
        %v274 = vadd.f32 %v273, %v267
        %v275 = vadd.f32 %v274, %v268
        %v276 = vadd.f32 %v275, %v269
        %277 = vadd.xlane.f32.xlu0 %v276
        %v278 = vpop.xlane.xlu0 %277
        %v279 = vrot.slane %v278, 4
        %v280 = vadd.f32 %v278, %v279
        %v281 = vrot.slane %v280, 2
        %v282 = vadd.f32 %v280, %v281
        %v283 = vrot.slane %v282, 1
        %v284 = vadd.f32 %v282, %v283
        %s285 = vtos %v284
        %s286 = smul.f32 %s285, 0.00012207031
        %s287 = sadd.f32 %s286, 1e-05
        %v288 = vstv %s287
        %v289 = vrsqrt.pop %v288
        %s290 = vtos %v289
        %v291 = vstv %s290
        %v292 = vmul.f32 %v254, %v291
        %v293 = vmul.f32 %v255, %v291
        %v294 = vmul.f32 %v256, %v291
        %v295 = vmul.f32 %v257, %v291
        %v296 = vmul.f32 %v258, %v291
        %v297 = vmul.f32 %v259, %v291
        %v298 = vmul.f32 %v260, %v291
        %v299 = vmul.f32 %v261, %v291
        %301 = vset.pattern.permute.xlu0 10
        %302 = vperm.xlu0 %301, %v189
        %v303 = vpop.permute.xlu0 %302
        %306 = vset.pattern.permute.xlu0 10
        %307 = vperm.xlu0 %306, %v190
        %v308 = vpop.permute.xlu0 %307
        %311 = vset.pattern.permute.xlu0 10
        %312 = vperm.xlu0 %311, %v191
        %v313 = vpop.permute.xlu0 %312
        %316 = vset.pattern.permute.xlu0 10
        %317 = vperm.xlu0 %316, %v192
        %v318 = vpop.permute.xlu0 %317
        %vm320 = vcmask 261120
        %v322 = vsel %vm320, %v169, 0
        %v325 = vsel %vm320, %v170, 0
        %v328 = vsel %vm320, %v171, 0
        %v331 = vsel %vm320, %v172, 0
        %333 = vmatprep.subr.mxu0 %v293
        %334 = vmatpush1.msra.mxu0 %v292
        %335 = vmatprep.subr.mxu0 %v295
        %336 = vmatpush1.msra.mxu0 %v294
        %337 = vmatprep.subr.mxu0 %v297
        %338 = vmatpush1.msra.mxu0 %v296
        %339 = vmatprep.subr.mxu0 %v299
        %340 = vmatpush1.msra.mxu0 %v298
        %341 = vmatprep.subr.mxu0 0.0
        %342 = vmatpush1.msra.mxu0 0.0
        %343 = vmatprep.subr.mxu0 0.0
        %344 = vmatpush1.msra.mxu0 0.0
        %345 = vmatprep.subr.mxu0 0.0
        %346 = vmatpush1.msra.mxu0 0.0
        %347 = vmatprep.subr.mxu0 0.0
        %348 = vmatpush1.msra.mxu0 0.0
        %349 = vmatprep.subr.mxu0 0.0
        %350 = vmatpush1.msra.mxu0 0.0
        %351 = vmatprep.subr.mxu0 0.0
        %352 = vmatpush1.msra.mxu0 0.0
        %353 = vmatprep.subr.mxu0 0.0
        %354 = vmatpush1.msra.mxu0 0.0
        %355 = vmatprep.subr.mxu0 0.0
        %356 = vmatpush1.msra.mxu0 0.0
        %357 = vmatprep.subr.mxu0 0.0
        %358 = vmatpush1.msra.mxu0 0.0
        %359 = vmatprep.subr.mxu0 0.0
        %360 = vmatpush1.msra.mxu0 0.0
        %361 = vmatprep.subr.mxu0 0.0
        %362 = vmatpush1.msra.mxu0 0.0
        %363 = vmatprep.subr.mxu0 0.0
        %364 = vmatpush1.msra.mxu0 0.0
        %365 = vmatprep.subr.mxu0 0.0
        %366 = vmatpush1.msra.mxu0 0.0
        %367 = vmatprep.subr.mxu0 0.0
        %368 = vmatpush1.msra.mxu0 0.0
        %369 = vmatprep.subr.mxu0 0.0
        %370 = vmatpush1.msra.mxu0 0.0
        %371 = vmatprep.subr.mxu0 0.0
        %372 = vmatpush1.msra.mxu0 0.0
        %373 = vmatprep.subr.mxu0 0.0
        %374 = vmatpush1.msra.mxu0 0.0
        %375 = vmatprep.subr.mxu0 0.0
        %376 = vmatpush1.msra.mxu0 0.0
        %377 = vmatprep.subr.mxu0 0.0
        %378 = vmatpush1.msra.mxu0 0.0
        %379 = vmatprep.subr.mxu0 0.0
        %380 = vmatpush1.msra.mxu0 0.0
        %381 = vmatprep.subr.mxu0 0.0
        %382 = vmatpush1.msra.mxu0 0.0
        %383 = vmatprep.subr.mxu0 0.0
        %384 = vmatpush1.msra.mxu0 0.0
        %385 = vmatprep.subr.mxu0 0.0
        %386 = vmatpush1.msra.mxu0 0.0
        %387 = vmatprep.subr.mxu0 0.0
        %388 = vmatpush1.msra.mxu0 0.0
        %389 = vmatprep.subr.mxu0 0.0
        %390 = vmatpush1.msra.mxu0 0.0
        %391 = vmatprep.subr.mxu0 0.0
        %392 = vmatpush1.msra.mxu0 0.0
        %393 = vmatprep.subr.mxu0 0.0
        %394 = vmatpush1.msra.mxu0 0.0
        %395 = vmatprep.subr.mxu0 0.0
        %396 = vmatpush1.msra.mxu0 0.0
        %397 = vmatprep.mubr.f32.mxu0 0.0
        %398 = vmatmul.mubr.f32.gmra.mrb[0].mxu0 %v322
        %v399 = vpop.f32.mrb[0].mxu0
        %v400 = vadd.f32 %v303, %v399
        %v401 = vpop.f32.mrb[0].mxu0
        %v402 = vadd.f32 %v303, %v401
        %403 = vmatprep.mubr.f32.mxu0 0.0
        %404 = vmatmul.mubr.f32.gmra.mrb[0].mxu0 %v325
        %v405 = vpop.f32.mrb[0].mxu0
        %v406 = vadd.f32 %v308, %v405
        %v407 = vpop.f32.mrb[0].mxu0
        %v408 = vadd.f32 %v308, %v407
        %409 = vmatprep.mubr.f32.mxu0 0.0
        %410 = vmatmul.mubr.f32.gmra.mrb[0].mxu0 %v328
        %v411 = vpop.f32.mrb[0].mxu0
        %v412 = vadd.f32 %v313, %v411
        %v413 = vpop.f32.mrb[0].mxu0
        %v414 = vadd.f32 %v313, %v413
        %415 = vmatprep.mubr.f32.mxu0 0.0
        %416 = vmatmul.mubr.f32.gmra.mrb[0].mxu0 %v331
        %v417 = vpop.f32.mrb[0].mxu0
        %v418 = vadd.f32 %v318, %v417
        %v419 = vpop.f32.mrb[0].mxu0
        %v420 = vadd.f32 %v318, %v419
        %421 = vdwg.mxu0
        %422 = vset.pattern.permute.xlu0 4
        %423 = vperm.xlu0 %422, %v189
        %v424 = vpop.permute.xlu0 %423
        %426 = vset.pattern.permute.xlu0 4
        %427 = vperm.xlu0 %426, %v190
        %v428 = vpop.permute.xlu0 %427
        %430 = vset.pattern.permute.xlu0 4
        %431 = vperm.xlu0 %430, %v191
        %v432 = vpop.permute.xlu0 %431
        %434 = vset.pattern.permute.xlu0 4
        %435 = vperm.xlu0 %434, %v192
        %v436 = vpop.permute.xlu0 %435
        %v438 = vmul.f32 %v400, %v424
        %v439 = vmul.f32 %v402, %v424
        %v440 = vmul.f32 %v406, %v428
        %v441 = vmul.f32 %v408, %v428
        %v442 = vmul.f32 %v412, %v432
        %v443 = vmul.f32 %v414, %v432
        %v444 = vmul.f32 %v418, %v436
        %v445 = vmul.f32 %v420, %v436
        %446 = vset.pattern.permute.xlu0 9
        %447 = vperm.xlu0 %446, %v189
        %v448 = vpop.permute.xlu0 %447
        %450 = vset.pattern.permute.xlu0 9
        %451 = vperm.xlu0 %450, %v190
        %v452 = vpop.permute.xlu0 %451
        %454 = vset.pattern.permute.xlu0 9
        %455 = vperm.xlu0 %454, %v191
        %v456 = vpop.permute.xlu0 %455
        %458 = vset.pattern.permute.xlu0 9
        %459 = vperm.xlu0 %458, %v192
        %v460 = vpop.permute.xlu0 %459
        %v462 = vadd.f32 %v438, %v448
        %v463 = vadd.f32 %v439, %v448
        %v464 = vadd.f32 %v440, %v452
        %v465 = vadd.f32 %v441, %v452
        %v466 = vadd.f32 %v442, %v456
        %v467 = vadd.f32 %v443, %v456
        %v468 = vadd.f32 %v444, %v460
        %v469 = vadd.f32 %v445, %v460
        %470 = vrot.lane.b32.xlu0 %v400, 17
        %v471 = vpop.permute.xlu0 %470
        %472 = vrot.lane.b32.xlu0 %v406, 17
        %v473 = vpop.permute.xlu0 %472
        %474 = vrot.lane.b32.xlu0 %v412, 17
        %v475 = vpop.permute.xlu0 %474
        %476 = vrot.lane.b32.xlu0 %v418, 17
        %v477 = vpop.permute.xlu0 %476
        %478 = vrot.lane.b32.xlu0 %v402, 17
        %v479 = vpop.permute.xlu0 %478
        %480 = vrot.lane.b32.xlu0 %v408, 17
        %v481 = vpop.permute.xlu0 %480
        %482 = vrot.lane.b32.xlu0 %v414, 17
        %v483 = vpop.permute.xlu0 %482
        %484 = vrot.lane.b32.xlu0 %v420, 17
        %v485 = vpop.permute.xlu0 %484
        %vm486 = vcmp.lt.s32.totalorder %v194, 17
        %v487 = vsel %vm486, %v471, %v479
        %v488 = vsel %vm486, %v473, %v481
        %v489 = vsel %vm486, %v475, %v483
        %v490 = vsel %vm486, %v477, %v485
        %v491 = vsel %vm486, %v479, %v471
        %v492 = vsel %vm486, %v481, %v473
        %v493 = vsel %vm486, %v483, %v475
        %v494 = vsel %vm486, %v485, %v477
        %vm495 = vmand %vm220, %vm224
        %vm496 = vmand %vm221, %vm225
        %v497 = vsel %vm495, 1, 0
        %v498 = vsel %vm496, 1, 0
        %vm499 = vcmp.eq.s32.totalorder %v497, 1
        %vm500 = vcmp.eq.s32.totalorder %v498, 1
        %v501 = vsel %vm499, %v491, 0.0
        %v502 = vsel %vm500, %v487, 0.0
        %v503 = vsel %vm499, %v492, 0.0
        %v504 = vsel %vm500, %v488, 0.0
        %v505 = vsel %vm499, %v493, 0.0
        %v506 = vsel %vm500, %v489, 0.0
        %v507 = vsel %vm499, %v494, 0.0
        %v508 = vsel %vm500, %v490, 0.0
        %509 = vset.pattern.permute.xlu0 0
        %510 = vperm.xlu0 %509, %v189
        %v511 = vpop.permute.xlu0 %510
        %513 = vset.pattern.permute.xlu0 0
        %514 = vperm.xlu0 %513, %v190
        %v515 = vpop.permute.xlu0 %514
        %517 = vset.pattern.permute.xlu0 0
        %518 = vperm.xlu0 %517, %v191
        %v519 = vpop.permute.xlu0 %518
        %521 = vset.pattern.permute.xlu0 0
        %522 = vperm.xlu0 %521, %v192
        %v523 = vpop.permute.xlu0 %522
        %v525 = vmul.f32 %v501, %v511
        %v526 = vmul.f32 %v502, %v511
        %v527 = vmul.f32 %v503, %v515
        %v528 = vmul.f32 %v504, %v515
        %v529 = vmul.f32 %v505, %v519
        %v530 = vmul.f32 %v506, %v519
        %v531 = vmul.f32 %v507, %v523
        %v532 = vmul.f32 %v508, %v523
        %v533 = vadd.f32 %v462, %v525
        %v534 = vadd.f32 %v463, %v526
        %v535 = vadd.f32 %v464, %v527
        %v536 = vadd.f32 %v465, %v528
        %v537 = vadd.f32 %v466, %v529
        %v538 = vadd.f32 %v467, %v530
        %v539 = vadd.f32 %v468, %v531
        %v540 = vadd.f32 %v469, %v532
        %541 = vrot.lane.b32.xlu0 %v400, 16
        %v542 = vpop.permute.xlu0 %541
        %543 = vrot.lane.b32.xlu0 %v406, 16
        %v544 = vpop.permute.xlu0 %543
        %545 = vrot.lane.b32.xlu0 %v412, 16
        %v546 = vpop.permute.xlu0 %545
        %547 = vrot.lane.b32.xlu0 %v418, 16
        %v548 = vpop.permute.xlu0 %547
        %549 = vrot.lane.b32.xlu0 %v402, 16
        %v550 = vpop.permute.xlu0 %549
        %551 = vrot.lane.b32.xlu0 %v408, 16
        %v552 = vpop.permute.xlu0 %551
        %553 = vrot.lane.b32.xlu0 %v414, 16
        %v554 = vpop.permute.xlu0 %553
        %555 = vrot.lane.b32.xlu0 %v420, 16
        %v556 = vpop.permute.xlu0 %555
        %vm557 = vcmp.lt.s32.totalorder %v194, 16
        %v558 = vsel %vm557, %v542, %v550
        %v559 = vsel %vm557, %v544, %v552
        %v560 = vsel %vm557, %v546, %v554
        %v561 = vsel %vm557, %v548, %v556
        %v562 = vsel %vm557, %v550, %v542
        %v563 = vsel %vm557, %v552, %v544
        %v564 = vsel %vm557, %v554, %v546
        %v565 = vsel %vm557, %v556, %v548
        %v566 = vsel %vm220, 1, 0
        %v567 = vsel %vm221, 1, 0
        %vm568 = vcmp.eq.s32.totalorder %v566, 1
        %vm569 = vcmp.eq.s32.totalorder %v567, 1
        %v570 = vsel %vm568, %v562, 0.0
        %v571 = vsel %vm569, %v558, 0.0
        %v572 = vsel %vm568, %v563, 0.0
        %v573 = vsel %vm569, %v559, 0.0
        %v574 = vsel %vm568, %v564, 0.0
        %v575 = vsel %vm569, %v560, 0.0
        %v576 = vsel %vm568, %v565, 0.0
        %v577 = vsel %vm569, %v561, 0.0
        %578 = vset.pattern.permute.xlu0 1
        %579 = vperm.xlu0 %578, %v189
        %v580 = vpop.permute.xlu0 %579
        %582 = vset.pattern.permute.xlu0 1
        %583 = vperm.xlu0 %582, %v190
        %v584 = vpop.permute.xlu0 %583
        %586 = vset.pattern.permute.xlu0 1
        %587 = vperm.xlu0 %586, %v191
        %v588 = vpop.permute.xlu0 %587
        %590 = vset.pattern.permute.xlu0 1
        %591 = vperm.xlu0 %590, %v192
        %v592 = vpop.permute.xlu0 %591
        %v594 = vmul.f32 %v570, %v580
        %v595 = vmul.f32 %v571, %v580
        %v596 = vmul.f32 %v572, %v584
        %v597 = vmul.f32 %v573, %v584
        %v598 = vmul.f32 %v574, %v588
        %v599 = vmul.f32 %v575, %v588
        %v600 = vmul.f32 %v576, %v592
        %v601 = vmul.f32 %v577, %v592
        %v602 = vadd.f32 %v533, %v594
        %v603 = vadd.f32 %v534, %v595
        %v604 = vadd.f32 %v535, %v596
        %v605 = vadd.f32 %v536, %v597
        %v606 = vadd.f32 %v537, %v598
        %v607 = vadd.f32 %v538, %v599
        %v608 = vadd.f32 %v539, %v600
        %v609 = vadd.f32 %v540, %v601
        %610 = vrot.lane.b32.xlu0 %v400, 15
        %v611 = vpop.permute.xlu0 %610
        %612 = vrot.lane.b32.xlu0 %v406, 15
        %v613 = vpop.permute.xlu0 %612
        %614 = vrot.lane.b32.xlu0 %v412, 15
        %v615 = vpop.permute.xlu0 %614
        %616 = vrot.lane.b32.xlu0 %v418, 15
        %v617 = vpop.permute.xlu0 %616
        %618 = vrot.lane.b32.xlu0 %v402, 15
        %v619 = vpop.permute.xlu0 %618
        %620 = vrot.lane.b32.xlu0 %v408, 15
        %v621 = vpop.permute.xlu0 %620
        %622 = vrot.lane.b32.xlu0 %v414, 15
        %v623 = vpop.permute.xlu0 %622
        %624 = vrot.lane.b32.xlu0 %v420, 15
        %v625 = vpop.permute.xlu0 %624
        %vm626 = vcmp.lt.s32.totalorder %v194, 15
        %v627 = vsel %vm626, %v611, %v619
        %v628 = vsel %vm626, %v613, %v621
        %v629 = vsel %vm626, %v615, %v623
        %v630 = vsel %vm626, %v617, %v625
        %v631 = vsel %vm626, %v619, %v611
        %v632 = vsel %vm626, %v621, %v613
        %v633 = vsel %vm626, %v623, %v615
        %v634 = vsel %vm626, %v625, %v617
        %vm635 = vmand %vm220, %vm226
        %vm636 = vmand %vm221, %vm227
        %v637 = vsel %vm635, 1, 0
        %v638 = vsel %vm636, 1, 0
        %vm639 = vcmp.eq.s32.totalorder %v637, 1
        %vm640 = vcmp.eq.s32.totalorder %v638, 1
        %v641 = vsel %vm639, %v631, 0.0
        %v642 = vsel %vm640, %v627, 0.0
        %v643 = vsel %vm639, %v632, 0.0
        %v644 = vsel %vm640, %v628, 0.0
        %v645 = vsel %vm639, %v633, 0.0
        %v646 = vsel %vm640, %v629, 0.0
        %v647 = vsel %vm639, %v634, 0.0
        %v648 = vsel %vm640, %v630, 0.0
        %649 = vset.pattern.permute.xlu0 2
        %650 = vperm.xlu0 %649, %v189
        %v651 = vpop.permute.xlu0 %650
        %653 = vset.pattern.permute.xlu0 2
        %654 = vperm.xlu0 %653, %v190
        %v655 = vpop.permute.xlu0 %654
        %657 = vset.pattern.permute.xlu0 2
        %658 = vperm.xlu0 %657, %v191
        %v659 = vpop.permute.xlu0 %658
        %661 = vset.pattern.permute.xlu0 2
        %662 = vperm.xlu0 %661, %v192
        %v663 = vpop.permute.xlu0 %662
        %v665 = vmul.f32 %v641, %v651
        %v666 = vmul.f32 %v642, %v651
        %v667 = vmul.f32 %v643, %v655
        %v668 = vmul.f32 %v644, %v655
        %v669 = vmul.f32 %v645, %v659
        %v670 = vmul.f32 %v646, %v659
        %v671 = vmul.f32 %v647, %v663
        %v672 = vmul.f32 %v648, %v663
        %v673 = vadd.f32 %v602, %v665
        %v674 = vadd.f32 %v603, %v666
        %v675 = vadd.f32 %v604, %v667
        %v676 = vadd.f32 %v605, %v668
        %v677 = vadd.f32 %v606, %v669
        %v678 = vadd.f32 %v607, %v670
        %v679 = vadd.f32 %v608, %v671
        %v680 = vadd.f32 %v609, %v672
        %681 = vrot.lane.b32.xlu0 %v400, 1
        %v682 = vpop.permute.xlu0 %681
        %683 = vrot.lane.b32.xlu0 %v406, 1
        %v684 = vpop.permute.xlu0 %683
        %685 = vrot.lane.b32.xlu0 %v412, 1
        %v686 = vpop.permute.xlu0 %685
        %687 = vrot.lane.b32.xlu0 %v418, 1
        %v688 = vpop.permute.xlu0 %687
        %689 = vrot.lane.b32.xlu0 %v402, 1
        %v690 = vpop.permute.xlu0 %689
        %691 = vrot.lane.b32.xlu0 %v408, 1
        %v692 = vpop.permute.xlu0 %691
        %693 = vrot.lane.b32.xlu0 %v414, 1
        %v694 = vpop.permute.xlu0 %693
        %695 = vrot.lane.b32.xlu0 %v420, 1
        %v696 = vpop.permute.xlu0 %695
        %vm697 = vcmp.lt.s32.totalorder %v194, 1
        %v698 = vsel %vm697, %v682, %v690
        %v699 = vsel %vm697, %v684, %v692
        %v700 = vsel %vm697, %v686, %v694
        %v701 = vsel %vm697, %v688, %v696
        %v702 = vsel %vm697, %v690, %v682
        %v703 = vsel %vm697, %v692, %v684
        %v704 = vsel %vm697, %v694, %v686
        %v705 = vsel %vm697, %v696, %v688
        %v706 = vsel %vm224, 1, 0
        %v707 = vsel %vm225, 1, 0
        %vm708 = vcmp.eq.s32.totalorder %v706, 1
        %vm709 = vcmp.eq.s32.totalorder %v707, 1
        %v710 = vsel %vm708, %v702, 0.0
        %v711 = vsel %vm709, %v698, 0.0
        %v712 = vsel %vm708, %v703, 0.0
        %v713 = vsel %vm709, %v699, 0.0
        %v714 = vsel %vm708, %v704, 0.0
        %v715 = vsel %vm709, %v700, 0.0
        %v716 = vsel %vm708, %v705, 0.0
        %v717 = vsel %vm709, %v701, 0.0
        %718 = vset.pattern.permute.xlu0 3
        %719 = vperm.xlu0 %718, %v189
        %v720 = vpop.permute.xlu0 %719
        %722 = vset.pattern.permute.xlu0 3
        %723 = vperm.xlu0 %722, %v190
        %v724 = vpop.permute.xlu0 %723
        %726 = vset.pattern.permute.xlu0 3
        %727 = vperm.xlu0 %726, %v191
        %v728 = vpop.permute.xlu0 %727
        %730 = vset.pattern.permute.xlu0 3
        %731 = vperm.xlu0 %730, %v192
        %v732 = vpop.permute.xlu0 %731
        %v734 = vmul.f32 %v710, %v720
        %v735 = vmul.f32 %v711, %v720
        %v736 = vmul.f32 %v712, %v724
        %v737 = vmul.f32 %v713, %v724
        %v738 = vmul.f32 %v714, %v728
        %v739 = vmul.f32 %v715, %v728
        %v740 = vmul.f32 %v716, %v732
        %v741 = vmul.f32 %v717, %v732
        %v742 = vadd.f32 %v673, %v734
        %v743 = vadd.f32 %v674, %v735
        %v744 = vadd.f32 %v675, %v736
        %v745 = vadd.f32 %v676, %v737
        %v746 = vadd.f32 %v677, %v738
        %v747 = vadd.f32 %v678, %v739
        %v748 = vadd.f32 %v679, %v740
        %v749 = vadd.f32 %v680, %v741
        %750 = vrot.lane.b32.xlu0 %v400, 127
        %v751 = vpop.permute.xlu0 %750
        %752 = vrot.lane.b32.xlu0 %v406, 127
        %v753 = vpop.permute.xlu0 %752
        %754 = vrot.lane.b32.xlu0 %v412, 127
        %v755 = vpop.permute.xlu0 %754
        %756 = vrot.lane.b32.xlu0 %v418, 127
        %v757 = vpop.permute.xlu0 %756
        %758 = vrot.lane.b32.xlu0 %v402, 127
        %v759 = vpop.permute.xlu0 %758
        %760 = vrot.lane.b32.xlu0 %v408, 127
        %v761 = vpop.permute.xlu0 %760
        %762 = vrot.lane.b32.xlu0 %v414, 127
        %v763 = vpop.permute.xlu0 %762
        %764 = vrot.lane.b32.xlu0 %v420, 127
        %v765 = vpop.permute.xlu0 %764
        %vm766 = vcmp.lt.s32.totalorder %v194, 127
        %v767 = vsel %vm766, %v751, %v759
        %v768 = vsel %vm766, %v753, %v761
        %v769 = vsel %vm766, %v755, %v763
        %v770 = vsel %vm766, %v757, %v765
        %v771 = vsel %vm766, %v759, %v751
        %v772 = vsel %vm766, %v761, %v753
        %v773 = vsel %vm766, %v763, %v755
        %v774 = vsel %vm766, %v765, %v757
        %v775 = vsel %vm226, 1, 0
        %v776 = vsel %vm227, 1, 0
        %vm777 = vcmp.eq.s32.totalorder %v775, 1
        %vm778 = vcmp.eq.s32.totalorder %v776, 1
        %v779 = vsel %vm777, %v767, 0.0
        %v780 = vsel %vm778, %v771, 0.0
        %v781 = vsel %vm777, %v768, 0.0
        %v782 = vsel %vm778, %v772, 0.0
        %v783 = vsel %vm777, %v769, 0.0
        %v784 = vsel %vm778, %v773, 0.0
        %v785 = vsel %vm777, %v770, 0.0
        %v786 = vsel %vm778, %v774, 0.0
        %787 = vset.pattern.permute.xlu0 5
        %788 = vperm.xlu0 %787, %v189
        %v789 = vpop.permute.xlu0 %788
        %791 = vset.pattern.permute.xlu0 5
        %792 = vperm.xlu0 %791, %v190
        %v793 = vpop.permute.xlu0 %792
        %795 = vset.pattern.permute.xlu0 5
        %796 = vperm.xlu0 %795, %v191
        %v797 = vpop.permute.xlu0 %796
        %799 = vset.pattern.permute.xlu0 5
        %800 = vperm.xlu0 %799, %v192
        %v801 = vpop.permute.xlu0 %800
        %v803 = vmul.f32 %v779, %v789
        %v804 = vmul.f32 %v780, %v789
        %v805 = vmul.f32 %v781, %v793
        %v806 = vmul.f32 %v782, %v793
        %v807 = vmul.f32 %v783, %v797
        %v808 = vmul.f32 %v784, %v797
        %v809 = vmul.f32 %v785, %v801
        %v810 = vmul.f32 %v786, %v801
        %v811 = vadd.f32 %v742, %v803
        %v812 = vadd.f32 %v743, %v804
        %v813 = vadd.f32 %v744, %v805
        %v814 = vadd.f32 %v745, %v806
        %v815 = vadd.f32 %v746, %v807
        %v816 = vadd.f32 %v747, %v808
        %v817 = vadd.f32 %v748, %v809
        %v818 = vadd.f32 %v749, %v810
        %819 = vrot.lane.b32.xlu0 %v400, 113
        %v820 = vpop.permute.xlu0 %819
        %821 = vrot.lane.b32.xlu0 %v406, 113
        %v822 = vpop.permute.xlu0 %821
        %823 = vrot.lane.b32.xlu0 %v412, 113
        %v824 = vpop.permute.xlu0 %823
        %825 = vrot.lane.b32.xlu0 %v418, 113
        %v826 = vpop.permute.xlu0 %825
        %827 = vrot.lane.b32.xlu0 %v402, 113
        %v828 = vpop.permute.xlu0 %827
        %829 = vrot.lane.b32.xlu0 %v408, 113
        %v830 = vpop.permute.xlu0 %829
        %831 = vrot.lane.b32.xlu0 %v414, 113
        %v832 = vpop.permute.xlu0 %831
        %833 = vrot.lane.b32.xlu0 %v420, 113
        %v834 = vpop.permute.xlu0 %833
        %vm835 = vcmp.lt.s32.totalorder %v194, 113
        %v836 = vsel %vm835, %v820, %v828
        %v837 = vsel %vm835, %v822, %v830
        %v838 = vsel %vm835, %v824, %v832
        %v839 = vsel %vm835, %v826, %v834
        %v840 = vsel %vm835, %v828, %v820
        %v841 = vsel %vm835, %v830, %v822
        %v842 = vsel %vm835, %v832, %v824
        %v843 = vsel %vm835, %v834, %v826
        %vm844 = vmand %vm222, %vm224
        %vm845 = vmand %vm223, %vm225
        %v846 = vsel %vm844, 1, 0
        %v847 = vsel %vm845, 1, 0
        %vm848 = vcmp.eq.s32.totalorder %v846, 1
        %vm849 = vcmp.eq.s32.totalorder %v847, 1
        %v850 = vsel %vm848, %v836, 0.0
        %v851 = vsel %vm849, %v840, 0.0
        %v852 = vsel %vm848, %v837, 0.0
        %v853 = vsel %vm849, %v841, 0.0
        %v854 = vsel %vm848, %v838, 0.0
        %v855 = vsel %vm849, %v842, 0.0
        %v856 = vsel %vm848, %v839, 0.0
        %v857 = vsel %vm849, %v843, 0.0
        %858 = vset.pattern.permute.xlu0 6
        %859 = vperm.xlu0 %858, %v189
        %v860 = vpop.permute.xlu0 %859
        %862 = vset.pattern.permute.xlu0 6
        %863 = vperm.xlu0 %862, %v190
        %v864 = vpop.permute.xlu0 %863
        %866 = vset.pattern.permute.xlu0 6
        %867 = vperm.xlu0 %866, %v191
        %v868 = vpop.permute.xlu0 %867
        %870 = vset.pattern.permute.xlu0 6
        %871 = vperm.xlu0 %870, %v192
        %v872 = vpop.permute.xlu0 %871
        %v874 = vmul.f32 %v850, %v860
        %v875 = vmul.f32 %v851, %v860
        %v876 = vmul.f32 %v852, %v864
        %v877 = vmul.f32 %v853, %v864
        %v878 = vmul.f32 %v854, %v868
        %v879 = vmul.f32 %v855, %v868
        %v880 = vmul.f32 %v856, %v872
        %v881 = vmul.f32 %v857, %v872
        %v882 = vadd.f32 %v811, %v874
        %v883 = vadd.f32 %v812, %v875
        %v884 = vadd.f32 %v813, %v876
        %v885 = vadd.f32 %v814, %v877
        %v886 = vadd.f32 %v815, %v878
        %v887 = vadd.f32 %v816, %v879
        %v888 = vadd.f32 %v817, %v880
        %v889 = vadd.f32 %v818, %v881
        %890 = vrot.lane.b32.xlu0 %v400, 112
        %v891 = vpop.permute.xlu0 %890
        %892 = vrot.lane.b32.xlu0 %v406, 112
        %v893 = vpop.permute.xlu0 %892
        %894 = vrot.lane.b32.xlu0 %v412, 112
        %v895 = vpop.permute.xlu0 %894
        %896 = vrot.lane.b32.xlu0 %v418, 112
        %v897 = vpop.permute.xlu0 %896
        %898 = vrot.lane.b32.xlu0 %v402, 112
        %v899 = vpop.permute.xlu0 %898
        %900 = vrot.lane.b32.xlu0 %v408, 112
        %v901 = vpop.permute.xlu0 %900
        %902 = vrot.lane.b32.xlu0 %v414, 112
        %v903 = vpop.permute.xlu0 %902
        %904 = vrot.lane.b32.xlu0 %v420, 112
        %v905 = vpop.permute.xlu0 %904
        %vm906 = vcmp.lt.s32.totalorder %v194, 112
        %v907 = vsel %vm906, %v891, %v899
        %v908 = vsel %vm906, %v893, %v901
        %v909 = vsel %vm906, %v895, %v903
        %v910 = vsel %vm906, %v897, %v905
        %v911 = vsel %vm906, %v899, %v891
        %v912 = vsel %vm906, %v901, %v893
        %v913 = vsel %vm906, %v903, %v895
        %v914 = vsel %vm906, %v905, %v897
        %v915 = vsel %vm222, 1, 0
        %v916 = vsel %vm223, 1, 0
        %vm917 = vcmp.eq.s32.totalorder %v915, 1
        %vm918 = vcmp.eq.s32.totalorder %v916, 1
        %v919 = vsel %vm917, %v907, 0.0
        %v920 = vsel %vm918, %v911, 0.0
        %v921 = vsel %vm917, %v908, 0.0
        %v922 = vsel %vm918, %v912, 0.0
        %v923 = vsel %vm917, %v909, 0.0
        %v924 = vsel %vm918, %v913, 0.0
        %v925 = vsel %vm917, %v910, 0.0
        %v926 = vsel %vm918, %v914, 0.0
        %927 = vset.pattern.permute.xlu0 7
        %928 = vperm.xlu0 %927, %v189
        %v929 = vpop.permute.xlu0 %928
        %931 = vset.pattern.permute.xlu0 7
        %932 = vperm.xlu0 %931, %v190
        %v933 = vpop.permute.xlu0 %932
        %935 = vset.pattern.permute.xlu0 7
        %936 = vperm.xlu0 %935, %v191
        %v937 = vpop.permute.xlu0 %936
        %939 = vset.pattern.permute.xlu0 7
        %940 = vperm.xlu0 %939, %v192
        %v941 = vpop.permute.xlu0 %940
        %v943 = vmul.f32 %v919, %v929
        %v944 = vmul.f32 %v920, %v929
        %v945 = vmul.f32 %v921, %v933
        %v946 = vmul.f32 %v922, %v933
        %v947 = vmul.f32 %v923, %v937
        %v948 = vmul.f32 %v924, %v937
        %v949 = vmul.f32 %v925, %v941
        %v950 = vmul.f32 %v926, %v941
        %v951 = vadd.f32 %v882, %v943
        %v952 = vadd.f32 %v883, %v944
        %v953 = vadd.f32 %v884, %v945
        %v954 = vadd.f32 %v885, %v946
        %v955 = vadd.f32 %v886, %v947
        %v956 = vadd.f32 %v887, %v948
        %v957 = vadd.f32 %v888, %v949
        %v958 = vadd.f32 %v889, %v950
        %959 = vrot.lane.b32.xlu0 %v400, 111
        %v960 = vpop.permute.xlu0 %959
        %961 = vrot.lane.b32.xlu0 %v406, 111
        %v962 = vpop.permute.xlu0 %961
        %963 = vrot.lane.b32.xlu0 %v412, 111
        %v964 = vpop.permute.xlu0 %963
        %965 = vrot.lane.b32.xlu0 %v418, 111
        %v966 = vpop.permute.xlu0 %965
        %967 = vrot.lane.b32.xlu0 %v402, 111
        %v968 = vpop.permute.xlu0 %967
        %969 = vrot.lane.b32.xlu0 %v408, 111
        %v970 = vpop.permute.xlu0 %969
        %971 = vrot.lane.b32.xlu0 %v414, 111
        %v972 = vpop.permute.xlu0 %971
        %973 = vrot.lane.b32.xlu0 %v420, 111
        %v974 = vpop.permute.xlu0 %973
        %vm975 = vcmp.lt.s32.totalorder %v194, 111
        %v976 = vsel %vm975, %v960, %v968
        %v977 = vsel %vm975, %v962, %v970
        %v978 = vsel %vm975, %v964, %v972
        %v979 = vsel %vm975, %v966, %v974
        %v980 = vsel %vm975, %v968, %v960
        %v981 = vsel %vm975, %v970, %v962
        %v982 = vsel %vm975, %v972, %v964
        %v983 = vsel %vm975, %v974, %v966
        %vm984 = vmand %vm222, %vm226
        %vm985 = vmand %vm223, %vm227
        %v986 = vsel %vm984, 1, 0
        %v987 = vsel %vm985, 1, 0
        %vm988 = vcmp.eq.s32.totalorder %v986, 1
        %vm989 = vcmp.eq.s32.totalorder %v987, 1
        %v990 = vsel %vm988, %v976, 0.0
        %v991 = vsel %vm989, %v980, 0.0
        %v992 = vsel %vm988, %v977, 0.0
        %v993 = vsel %vm989, %v981, 0.0
        %v994 = vsel %vm988, %v978, 0.0
        %v995 = vsel %vm989, %v982, 0.0
        %v996 = vsel %vm988, %v979, 0.0
        %v997 = vsel %vm989, %v983, 0.0
        %998 = vset.pattern.permute.xlu0 8
        %999 = vperm.xlu0 %998, %v189
        %v1000 = vpop.permute.xlu0 %999
        %1002 = vset.pattern.permute.xlu0 8
        %1003 = vperm.xlu0 %1002, %v190
        %v1004 = vpop.permute.xlu0 %1003
        %1006 = vset.pattern.permute.xlu0 8
        %1007 = vperm.xlu0 %1006, %v191
        %v1008 = vpop.permute.xlu0 %1007
        %1010 = vset.pattern.permute.xlu0 8
        %1011 = vperm.xlu0 %1010, %v192
        %v1012 = vpop.permute.xlu0 %1011
        %v1014 = vmul.f32 %v990, %v1000
        %v1015 = vmul.f32 %v991, %v1000
        %v1016 = vmul.f32 %v992, %v1004
        %v1017 = vmul.f32 %v993, %v1004
        %v1018 = vmul.f32 %v994, %v1008
        %v1019 = vmul.f32 %v995, %v1008
        %v1020 = vmul.f32 %v996, %v1012
        %v1021 = vmul.f32 %v997, %v1012
        %v1022 = vadd.f32 %v951, %v1014
        %v1023 = vadd.f32 %v952, %v1015
        %v1024 = vadd.f32 %v953, %v1016
        %v1025 = vadd.f32 %v954, %v1017
        %v1026 = vadd.f32 %v955, %v1018
        %v1027 = vadd.f32 %v956, %v1019
        %v1028 = vadd.f32 %v957, %v1020
        %v1029 = vadd.f32 %v958, %v1021
        %v1030 = vmul.f32 %v1022, 0.5
        %v1031 = vmul.f32 %v1023, 0.5
        %v1032 = vmul.f32 %v1024, 0.5
        %v1033 = vmul.f32 %v1025, 0.5
        %v1034 = vmul.f32 %v1026, 0.5
        %v1035 = vmul.f32 %v1027, 0.5
        %v1036 = vmul.f32 %v1028, 0.5
        %v1037 = vmul.f32 %v1029, 0.5
        %v1038 = vmul.f32 %v1022, 0.044715
        %v1039 = vmul.f32 %v1023, 0.044715
        %v1040 = vmul.f32 %v1024, 0.044715
        %v1041 = vmul.f32 %v1025, 0.044715
        %v1042 = vmul.f32 %v1026, 0.044715
        %v1043 = vmul.f32 %v1027, 0.044715
        %v1044 = vmul.f32 %v1028, 0.044715
        %v1045 = vmul.f32 %v1029, 0.044715
        %v1046 = vmul.f32 %v1038, %v1022
        %v1047 = vmul.f32 %v1039, %v1023
        %v1048 = vmul.f32 %v1040, %v1024
        %v1049 = vmul.f32 %v1041, %v1025
        %v1050 = vmul.f32 %v1042, %v1026
        %v1051 = vmul.f32 %v1043, %v1027
        %v1052 = vmul.f32 %v1044, %v1028
        %v1053 = vmul.f32 %v1045, %v1029
        %v1054 = vmul.f32 %v1046, %v1022
        %v1055 = vmul.f32 %v1047, %v1023
        %v1056 = vmul.f32 %v1048, %v1024
        %v1057 = vmul.f32 %v1049, %v1025
        %v1058 = vmul.f32 %v1050, %v1026
        %v1059 = vmul.f32 %v1051, %v1027
        %v1060 = vmul.f32 %v1052, %v1028
        %v1061 = vmul.f32 %v1053, %v1029
        %v1062 = vadd.f32 %v1022, %v1054
        %v1063 = vadd.f32 %v1023, %v1055
        %v1064 = vadd.f32 %v1024, %v1056
        %v1065 = vadd.f32 %v1025, %v1057
        %v1066 = vadd.f32 %v1026, %v1058
        %v1067 = vadd.f32 %v1027, %v1059
        %v1068 = vadd.f32 %v1028, %v1060
        %v1069 = vadd.f32 %v1029, %v1061
        %v1070 = vmul.f32 %v1062, 0.7978846
        %v1071 = vmul.f32 %v1063, 0.7978846
        %v1072 = vmul.f32 %v1064, 0.7978846
        %v1073 = vmul.f32 %v1065, 0.7978846
        %v1074 = vmul.f32 %v1066, 0.7978846
        %v1075 = vmul.f32 %v1067, 0.7978846
        %v1076 = vmul.f32 %v1068, 0.7978846
        %v1077 = vmul.f32 %v1069, 0.7978846
        %v1078 = vtanh.pop %v1070
        %v1079 = vtanh.pop %v1071
        %v1080 = vtanh.pop %v1072
        %v1081 = vtanh.pop %v1073
        %v1082 = vtanh.pop %v1074
        %v1083 = vtanh.pop %v1075
        %v1084 = vtanh.pop %v1076
        %v1085 = vtanh.pop %v1077
        %v1086 = vadd.f32 %v1078, 1.0
        %v1087 = vadd.f32 %v1079, 1.0
        %v1088 = vadd.f32 %v1080, 1.0
        %v1089 = vadd.f32 %v1081, 1.0
        %v1090 = vadd.f32 %v1082, 1.0
        %v1091 = vadd.f32 %v1083, 1.0
        %v1092 = vadd.f32 %v1084, 1.0
        %v1093 = vadd.f32 %v1085, 1.0
        %v1094 = vmul.f32 %v1030, %v1086
        %v1095 = vmul.f32 %v1031, %v1087
        %v1096 = vmul.f32 %v1032, %v1088
        %v1097 = vmul.f32 %v1033, %v1089
        %v1098 = vmul.f32 %v1034, %v1090
        %v1099 = vmul.f32 %v1035, %v1091
        %v1100 = vmul.f32 %v1036, %v1092
        %v1101 = vmul.f32 %v1037, %v1093
        %v1102 = vadd.f32 %v1094, %v1095
        %1103 = vadd.xlane.f32.xlu0 %v1102
        %v1104 = vpop.xlane.xlu0 %1103
        %v1105 = vadd.f32 %v1096, %v1097
        %1106 = vadd.xlane.f32.xlu0 %v1105
        %v1107 = vpop.xlane.xlu0 %1106
        %v1108 = vadd.f32 %v1098, %v1099
        %1109 = vadd.xlane.f32.xlu0 %v1108
        %v1110 = vpop.xlane.xlu0 %1109
        %v1111 = vadd.f32 %v1100, %v1101
        %1112 = vadd.xlane.f32.xlu0 %v1111
        %v1113 = vpop.xlane.xlu0 %1112
        %v1114 = vmul.f32 %v1104, 0.00390625
        %v1115 = vmul.f32 %v1107, 0.00390625
        %v1116 = vmul.f32 %v1110, 0.00390625
        %v1117 = vmul.f32 %v1113, 0.00390625
        %1118 = vrot.lane.b32.xlu0 %v189, 117
        %v1119 = vpop.permute.xlu0 %1118
        %1120 = vrot.lane.b32.xlu0 %v190, 117
        %v1121 = vpop.permute.xlu0 %1120
        %1122 = vrot.lane.b32.xlu0 %v191, 117
        %v1123 = vpop.permute.xlu0 %1122
        %1124 = vrot.lane.b32.xlu0 %v192, 117
        %v1125 = vpop.permute.xlu0 %1124
        %v1131 = vsel %vm320, %v173, 0
        %v1134 = vsel %vm320, %v174, 0
        %v1137 = vsel %vm320, %v175, 0
        %v1140 = vsel %vm320, %v176, 0
        %1142 = vmatprep.subr.mxu0 0.0
        %1143 = vmatpush1.msra.mxu0 %v1114
        %1144 = vmatprep.subr.mxu0 0.0
        %1145 = vmatpush1.msra.mxu0 %v1115
        %1146 = vmatprep.subr.mxu0 0.0
        %1147 = vmatpush1.msra.mxu0 %v1116
        %1148 = vmatprep.subr.mxu0 0.0
        %1149 = vmatpush1.msra.mxu0 %v1117
        %1150 = vmatprep.subr.mxu0 0.0
        %1151 = vmatpush1.msra.mxu0 0.0
        %1152 = vmatprep.subr.mxu0 0.0
        %1153 = vmatpush1.msra.mxu0 0.0
        %1154 = vmatprep.subr.mxu0 0.0
        %1155 = vmatpush1.msra.mxu0 0.0
        %1156 = vmatprep.subr.mxu0 0.0
        %1157 = vmatpush1.msra.mxu0 0.0
        %1158 = vmatprep.subr.mxu0 0.0
        %1159 = vmatpush1.msra.mxu0 0.0
        %1160 = vmatprep.subr.mxu0 0.0
        %1161 = vmatpush1.msra.mxu0 0.0
        %1162 = vmatprep.subr.mxu0 0.0
        %1163 = vmatpush1.msra.mxu0 0.0
        %1164 = vmatprep.subr.mxu0 0.0
        %1165 = vmatpush1.msra.mxu0 0.0
        %1166 = vmatprep.subr.mxu0 0.0
        %1167 = vmatpush1.msra.mxu0 0.0
        %1168 = vmatprep.subr.mxu0 0.0
        %1169 = vmatpush1.msra.mxu0 0.0
        %1170 = vmatprep.subr.mxu0 0.0
        %1171 = vmatpush1.msra.mxu0 0.0
        %1172 = vmatprep.subr.mxu0 0.0
        %1173 = vmatpush1.msra.mxu0 0.0
        %1174 = vmatprep.subr.mxu0 0.0
        %1175 = vmatpush1.msra.mxu0 0.0
        %1176 = vmatprep.subr.mxu0 0.0
        %1177 = vmatpush1.msra.mxu0 0.0
        %1178 = vmatprep.subr.mxu0 0.0
        %1179 = vmatpush1.msra.mxu0 0.0
        %1180 = vmatprep.subr.mxu0 0.0
        %1181 = vmatpush1.msra.mxu0 0.0
        %1182 = vmatprep.subr.mxu0 0.0
        %1183 = vmatpush1.msra.mxu0 0.0
        %1184 = vmatprep.subr.mxu0 0.0
        %1185 = vmatpush1.msra.mxu0 0.0
        %1186 = vmatprep.subr.mxu0 0.0
        %1187 = vmatpush1.msra.mxu0 0.0
        %1188 = vmatprep.subr.mxu0 0.0
        %1189 = vmatpush1.msra.mxu0 0.0
        %1190 = vmatprep.subr.mxu0 0.0
        %1191 = vmatpush1.msra.mxu0 0.0
        %1192 = vmatprep.subr.mxu0 0.0
        %1193 = vmatpush1.msra.mxu0 0.0
        %1194 = vmatprep.subr.mxu0 0.0
        %1195 = vmatpush1.msra.mxu0 0.0
        %1196 = vmatprep.subr.mxu0 0.0
        %1197 = vmatpush1.msra.mxu0 0.0
        %1198 = vmatprep.subr.mxu0 0.0
        %1199 = vmatpush1.msra.mxu0 0.0
        %1200 = vmatprep.subr.mxu0 0.0
        %1201 = vmatpush1.msra.mxu0 0.0
        %1202 = vmatprep.subr.mxu0 0.0
        %1203 = vmatpush1.msra.mxu0 0.0
        %1204 = vmatprep.subr.mxu0 0.0
        %1205 = vmatpush1.msra.mxu0 0.0
        %1206 = vmatprep.mubr.f32.mxu0 0.0
        %1207 = vmatmul.mubr.f32.gmra.mrb[0].mxu0 %v1131
        %v1208 = vpop.f32.mrb[0].mxu0
        %v1209 = vadd.f32 %v1119, %v1208
        %v1210 = vpop.f32.mrb[0].mxu0
        %1211 = vmatprep.mubr.f32.mxu0 0.0
        %1212 = vmatmul.mubr.f32.gmra.mrb[0].mxu0 %v1134
        %v1213 = vpop.f32.mrb[0].mxu0
        %v1214 = vadd.f32 %v1121, %v1213
        %v1215 = vpop.f32.mrb[0].mxu0
        %1216 = vmatprep.mubr.f32.mxu0 0.0
        %1217 = vmatmul.mubr.f32.gmra.mrb[0].mxu0 %v1137
        %v1218 = vpop.f32.mrb[0].mxu0
        %v1219 = vadd.f32 %v1123, %v1218
        %v1220 = vpop.f32.mrb[0].mxu0
        %1221 = vmatprep.mubr.f32.mxu0 0.0
        %1222 = vmatmul.mubr.f32.gmra.mrb[0].mxu0 %v1140
        %v1223 = vpop.f32.mrb[0].mxu0
        %v1224 = vadd.f32 %v1125, %v1223
        %v1225 = vpop.f32.mrb[0].mxu0
        %1226 = vdwg.mxu0
        %1228 = vset.pattern.permute.xlu0 0
        %1229 = vperm.xlu0 %1228, %v1209
        %v1230 = vpop.permute.xlu0 %1229
        %1233 = vset.pattern.permute.xlu0 0
        %1234 = vperm.xlu0 %1233, %v1214
        %v1235 = vpop.permute.xlu0 %1234
        %1238 = vset.pattern.permute.xlu0 0
        %1239 = vperm.xlu0 %1238, %v1219
        %v1240 = vpop.permute.xlu0 %1239
        %1243 = vset.pattern.permute.xlu0 0
        %1244 = vperm.xlu0 %1243, %v1224
        %v1245 = vpop.permute.xlu0 %1244
        %v1247 = vmul.f32 %v1094, %v1230
        %v1248 = vmul.f32 %v1095, %v1230
        %v1249 = vmul.f32 %v1096, %v1235
        %v1250 = vmul.f32 %v1097, %v1235
        %v1251 = vmul.f32 %v1098, %v1240
        %v1252 = vmul.f32 %v1099, %v1240
        %v1253 = vmul.f32 %v1100, %v1245
        %v1254 = vmul.f32 %v1101, %v1245
        %v1256 = vsel %vm320, %v177, 0
        %v1259 = vsel %vm320, %v178, 0
        %v1262 = vsel %vm320, %v179, 0
        %v1265 = vsel %vm320, %v180, 0
        %1267 = vmatprep.subr.mxu0 %v1248
        %1268 = vmatpush1.msra.mxu0 %v1247
        %1269 = vmatprep.subr.mxu0 %v1250
        %1270 = vmatpush1.msra.mxu0 %v1249
        %1271 = vmatprep.subr.mxu0 %v1252
        %1272 = vmatpush1.msra.mxu0 %v1251
        %1273 = vmatprep.subr.mxu0 %v1254
        %1274 = vmatpush1.msra.mxu0 %v1253
        %1275 = vmatprep.subr.mxu0 0.0
        %1276 = vmatpush1.msra.mxu0 0.0
        %1277 = vmatprep.subr.mxu0 0.0
        %1278 = vmatpush1.msra.mxu0 0.0
        %1279 = vmatprep.subr.mxu0 0.0
        %1280 = vmatpush1.msra.mxu0 0.0
        %1281 = vmatprep.subr.mxu0 0.0
        %1282 = vmatpush1.msra.mxu0 0.0
        %1283 = vmatprep.subr.mxu0 0.0
        %1284 = vmatpush1.msra.mxu0 0.0
        %1285 = vmatprep.subr.mxu0 0.0
        %1286 = vmatpush1.msra.mxu0 0.0
        %1287 = vmatprep.subr.mxu0 0.0
        %1288 = vmatpush1.msra.mxu0 0.0
        %1289 = vmatprep.subr.mxu0 0.0
        %1290 = vmatpush1.msra.mxu0 0.0
        %1291 = vmatprep.subr.mxu0 0.0
        %1292 = vmatpush1.msra.mxu0 0.0
        %1293 = vmatprep.subr.mxu0 0.0
        %1294 = vmatpush1.msra.mxu0 0.0
        %1295 = vmatprep.subr.mxu0 0.0
        %1296 = vmatpush1.msra.mxu0 0.0
        %1297 = vmatprep.subr.mxu0 0.0
        %1298 = vmatpush1.msra.mxu0 0.0
        %1299 = vmatprep.subr.mxu0 0.0
        %1300 = vmatpush1.msra.mxu0 0.0
        %1301 = vmatprep.subr.mxu0 0.0
        %1302 = vmatpush1.msra.mxu0 0.0
        %1303 = vmatprep.subr.mxu0 0.0
        %1304 = vmatpush1.msra.mxu0 0.0
        %1305 = vmatprep.subr.mxu0 0.0
        %1306 = vmatpush1.msra.mxu0 0.0
        %1307 = vmatprep.subr.mxu0 0.0
        %1308 = vmatpush1.msra.mxu0 0.0
        %1309 = vmatprep.subr.mxu0 0.0
        %1310 = vmatpush1.msra.mxu0 0.0
        %1311 = vmatprep.subr.mxu0 0.0
        %1312 = vmatpush1.msra.mxu0 0.0
        %1313 = vmatprep.subr.mxu0 0.0
        %1314 = vmatpush1.msra.mxu0 0.0
        %1315 = vmatprep.subr.mxu0 0.0
        %1316 = vmatpush1.msra.mxu0 0.0
        %1317 = vmatprep.subr.mxu0 0.0
        %1318 = vmatpush1.msra.mxu0 0.0
        %1319 = vmatprep.subr.mxu0 0.0
        %1320 = vmatpush1.msra.mxu0 0.0
        %1321 = vmatprep.subr.mxu0 0.0
        %1322 = vmatpush1.msra.mxu0 0.0
        %1323 = vmatprep.subr.mxu0 0.0
        %1324 = vmatpush1.msra.mxu0 0.0
        %1325 = vmatprep.subr.mxu0 0.0
        %1326 = vmatpush1.msra.mxu0 0.0
        %1327 = vmatprep.subr.mxu0 0.0
        %1328 = vmatpush1.msra.mxu0 0.0
        %1329 = vmatprep.subr.mxu0 0.0
        %1330 = vmatpush1.msra.mxu0 0.0
        %1331 = vmatprep.mubr.f32.mxu0 0.0
        %1332 = vmatmul.mubr.f32.gmra.mrb[0].mxu0 %v1256
        %v1333 = vpop.f32.mrb[0].mxu0
        %v1334 = vadd.f32 0.0, %v1333
        %v1335 = vpop.f32.mrb[0].mxu0
        %v1336 = vadd.f32 0.0, %v1335
        %1337 = vmatprep.mubr.f32.mxu0 0.0
        %1338 = vmatmul.mubr.f32.gmra.mrb[0].mxu0 %v1259
        %v1339 = vpop.f32.mrb[0].mxu0
        %v1340 = vadd.f32 0.0, %v1339
        %v1341 = vpop.f32.mrb[0].mxu0
        %v1342 = vadd.f32 0.0, %v1341
        %1343 = vmatprep.mubr.f32.mxu0 0.0
        %1344 = vmatmul.mubr.f32.gmra.mrb[0].mxu0 %v1262
        %v1345 = vpop.f32.mrb[0].mxu0
        %v1346 = vadd.f32 0.0, %v1345
        %v1347 = vpop.f32.mrb[0].mxu0
        %v1348 = vadd.f32 0.0, %v1347
        %1349 = vmatprep.mubr.f32.mxu0 0.0
        %1350 = vmatmul.mubr.f32.gmra.mrb[0].mxu0 %v1265
        %v1351 = vpop.f32.mrb[0].mxu0
        %v1352 = vadd.f32 0.0, %v1351
        %v1353 = vpop.f32.mrb[0].mxu0
        %v1354 = vadd.f32 0.0, %v1353
        %1355 = vdwg.mxu0
        %v1356 = vadd.f32 %v228, %v1334
        %v1357 = vadd.f32 %v229, %v1336
        %v1358 = vadd.f32 %v230, %v1340
        %v1359 = vadd.f32 %v231, %v1342
        %v1360 = vadd.f32 %v232, %v1346
        %v1361 = vadd.f32 %v233, %v1348
        %v1362 = vadd.f32 %v234, %v1352
        %v1363 = vadd.f32 %v235, %v1354
        %1364 = vset.pattern.permute.xlu0 12
        %1365 = vperm.xlu0 %1364, %v189
        %v1366 = vpop.permute.xlu0 %1365
        %1368 = vset.pattern.permute.xlu0 12
        %1369 = vperm.xlu0 %1368, %v190
        %v1370 = vpop.permute.xlu0 %1369
        %1372 = vset.pattern.permute.xlu0 12
        %1373 = vperm.xlu0 %1372, %v191
        %v1374 = vpop.permute.xlu0 %1373
        %1376 = vset.pattern.permute.xlu0 12
        %1377 = vperm.xlu0 %1376, %v192
        %v1378 = vpop.permute.xlu0 %1377
        %v1380 = vadd.f32 %v1356, %v1366
        %v1381 = vadd.f32 %v1357, %v1366
        %v1382 = vadd.f32 %v1358, %v1370
        %v1383 = vadd.f32 %v1359, %v1370
        %v1384 = vadd.f32 %v1360, %v1374
        %v1385 = vadd.f32 %v1361, %v1374
        %v1386 = vadd.f32 %v1362, %v1378
        %v1387 = vadd.f32 %v1363, %v1378
        %v1388 = vadd.f32 %v1380, %v1381
        %v1389 = vadd.f32 %v1388, %v1382
        %v1390 = vadd.f32 %v1389, %v1383
        %v1391 = vadd.f32 %v1390, %v1384
        %v1392 = vadd.f32 %v1391, %v1385
        %v1393 = vadd.f32 %v1392, %v1386
        %v1394 = vadd.f32 %v1393, %v1387
        %1395 = vadd.xlane.f32.xlu0 %v1394
        %v1396 = vpop.xlane.xlu0 %1395
        %v1397 = vrot.slane %v1396, 4
        %v1398 = vadd.f32 %v1396, %v1397
        %v1399 = vrot.slane %v1398, 2
        %v1400 = vadd.f32 %v1398, %v1399
        %v1401 = vrot.slane %v1400, 1
        %v1402 = vadd.f32 %v1400, %v1401
        %s1403 = vtos %v1402
        %s1404 = smul.f32 %s1403, 0.00012207031
        %v1405 = vstv %s1404
        %v1406 = vsub.f32 %v1380, %v1405
        %v1407 = vsub.f32 %v1381, %v1405
        %v1408 = vsub.f32 %v1382, %v1405
        %v1409 = vsub.f32 %v1383, %v1405
        %v1410 = vsub.f32 %v1384, %v1405
        %v1411 = vsub.f32 %v1385, %v1405
        %v1412 = vsub.f32 %v1386, %v1405
        %v1413 = vsub.f32 %v1387, %v1405
        %v1414 = vmul.f32 %v1406, %v1406
        %v1415 = vmul.f32 %v1407, %v1407
        %v1416 = vmul.f32 %v1408, %v1408
        %v1417 = vmul.f32 %v1409, %v1409
        %v1418 = vmul.f32 %v1410, %v1410
        %v1419 = vmul.f32 %v1411, %v1411
        %v1420 = vmul.f32 %v1412, %v1412
        %v1421 = vmul.f32 %v1413, %v1413
        %v1422 = vadd.f32 %v1414, %v1415
        %v1423 = vadd.f32 %v1422, %v1416
        %v1424 = vadd.f32 %v1423, %v1417
        %v1425 = vadd.f32 %v1424, %v1418
        %v1426 = vadd.f32 %v1425, %v1419
        %v1427 = vadd.f32 %v1426, %v1420
        %v1428 = vadd.f32 %v1427, %v1421
        %1429 = vadd.xlane.f32.xlu0 %v1428
        %v1430 = vpop.xlane.xlu0 %1429
        %v1431 = vrot.slane %v1430, 4
        %v1432 = vadd.f32 %v1430, %v1431
        %v1433 = vrot.slane %v1432, 2
        %v1434 = vadd.f32 %v1432, %v1433
        %v1435 = vrot.slane %v1434, 1
        %v1436 = vadd.f32 %v1434, %v1435
        %s1437 = vtos %v1436
        %s1438 = smul.f32 %s1437, 0.00012207031
        %s1439 = sadd.f32 %s1438, 1e-05
        %v1440 = vstv %s1439
        %v1441 = vrsqrt.pop %v1440
        %s1442 = vtos %v1441
        %v1443 = vstv %s1442
        %v1444 = vmul.f32 %v1406, %v1443
        %v1445 = vmul.f32 %v1407, %v1443
        %v1446 = vmul.f32 %v1408, %v1443
        %v1447 = vmul.f32 %v1409, %v1443
        %v1448 = vmul.f32 %v1410, %v1443
        %v1449 = vmul.f32 %v1411, %v1443
        %v1450 = vmul.f32 %v1412, %v1443
        %v1451 = vmul.f32 %v1413, %v1443
        %1452 = vset.pattern.permute.xlu0 13
        %1453 = vperm.xlu0 %1452, %v189
        %v1454 = vpop.permute.xlu0 %1453
        %1456 = vset.pattern.permute.xlu0 13
        %1457 = vperm.xlu0 %1456, %v190
        %v1458 = vpop.permute.xlu0 %1457
        %1460 = vset.pattern.permute.xlu0 13
        %1461 = vperm.xlu0 %1460, %v191
        %v1462 = vpop.permute.xlu0 %1461
        %1464 = vset.pattern.permute.xlu0 13
        %1465 = vperm.xlu0 %1464, %v192
        %v1466 = vpop.permute.xlu0 %1465
        %v1469 = vsel %vm320, %v181, 0
        %v1472 = vsel %vm320, %v182, 0
        %v1475 = vsel %vm320, %v183, 0
        %v1478 = vsel %vm320, %v184, 0
        %1480 = vmatprep.subr.mxu0 %v1445
        %1481 = vmatpush1.msra.mxu0 %v1444
        %1482 = vmatprep.subr.mxu0 %v1447
        %1483 = vmatpush1.msra.mxu0 %v1446
        %1484 = vmatprep.subr.mxu0 %v1449
        %1485 = vmatpush1.msra.mxu0 %v1448
        %1486 = vmatprep.subr.mxu0 %v1451
        %1487 = vmatpush1.msra.mxu0 %v1450
        %1488 = vmatprep.subr.mxu0 0.0
        %1489 = vmatpush1.msra.mxu0 0.0
        %1490 = vmatprep.subr.mxu0 0.0
        %1491 = vmatpush1.msra.mxu0 0.0
        %1492 = vmatprep.subr.mxu0 0.0
        %1493 = vmatpush1.msra.mxu0 0.0
        %1494 = vmatprep.subr.mxu0 0.0
        %1495 = vmatpush1.msra.mxu0 0.0
        %1496 = vmatprep.subr.mxu0 0.0
        %1497 = vmatpush1.msra.mxu0 0.0
        %1498 = vmatprep.subr.mxu0 0.0
        %1499 = vmatpush1.msra.mxu0 0.0
        %1500 = vmatprep.subr.mxu0 0.0
        %1501 = vmatpush1.msra.mxu0 0.0
        %1502 = vmatprep.subr.mxu0 0.0
        %1503 = vmatpush1.msra.mxu0 0.0
        %1504 = vmatprep.subr.mxu0 0.0
        %1505 = vmatpush1.msra.mxu0 0.0
        %1506 = vmatprep.subr.mxu0 0.0
        %1507 = vmatpush1.msra.mxu0 0.0
        %1508 = vmatprep.subr.mxu0 0.0
        %1509 = vmatpush1.msra.mxu0 0.0
        %1510 = vmatprep.subr.mxu0 0.0
        %1511 = vmatpush1.msra.mxu0 0.0
        %1512 = vmatprep.subr.mxu0 0.0
        %1513 = vmatpush1.msra.mxu0 0.0
        %1514 = vmatprep.subr.mxu0 0.0
        %1515 = vmatpush1.msra.mxu0 0.0
        %1516 = vmatprep.subr.mxu0 0.0
        %1517 = vmatpush1.msra.mxu0 0.0
        %1518 = vmatprep.subr.mxu0 0.0
        %1519 = vmatpush1.msra.mxu0 0.0
        %1520 = vmatprep.subr.mxu0 0.0
        %1521 = vmatpush1.msra.mxu0 0.0
        %1522 = vmatprep.subr.mxu0 0.0
        %1523 = vmatpush1.msra.mxu0 0.0
        %1524 = vmatprep.subr.mxu0 0.0
        %1525 = vmatpush1.msra.mxu0 0.0
        %1526 = vmatprep.subr.mxu0 0.0
        %1527 = vmatpush1.msra.mxu0 0.0
        %1528 = vmatprep.subr.mxu0 0.0
        %1529 = vmatpush1.msra.mxu0 0.0
        %1530 = vmatprep.subr.mxu0 0.0
        %1531 = vmatpush1.msra.mxu0 0.0
        %1532 = vmatprep.subr.mxu0 0.0
        %1533 = vmatpush1.msra.mxu0 0.0
        %1534 = vmatprep.subr.mxu0 0.0
        %1535 = vmatpush1.msra.mxu0 0.0
        %1536 = vmatprep.subr.mxu0 0.0
        %1537 = vmatpush1.msra.mxu0 0.0
        %1538 = vmatprep.subr.mxu0 0.0
        %1539 = vmatpush1.msra.mxu0 0.0
        %1540 = vmatprep.subr.mxu0 0.0
        %1541 = vmatpush1.msra.mxu0 0.0
        %1542 = vmatprep.subr.mxu0 0.0
        %1543 = vmatpush1.msra.mxu0 0.0
        %1544 = vmatprep.mubr.f32.mxu0 0.0
        %1545 = vmatmul.mubr.f32.gmra.mrb[0].mxu0 %v1469
        %v1546 = vpop.f32.mrb[0].mxu0
        %v1547 = vadd.f32 %v1454, %v1546
        %v1548 = vpop.f32.mrb[0].mxu0
        %v1549 = vadd.f32 %v1454, %v1548
        %1550 = vmatprep.mubr.f32.mxu0 0.0
        %1551 = vmatmul.mubr.f32.gmra.mrb[0].mxu0 %v1472
        %v1552 = vpop.f32.mrb[0].mxu0
        %v1553 = vadd.f32 %v1458, %v1552
        %v1554 = vpop.f32.mrb[0].mxu0
        %v1555 = vadd.f32 %v1458, %v1554
        %1556 = vmatprep.mubr.f32.mxu0 0.0
        %1557 = vmatmul.mubr.f32.gmra.mrb[0].mxu0 %v1475
        %v1558 = vpop.f32.mrb[0].mxu0
        %v1559 = vadd.f32 %v1462, %v1558
        %v1560 = vpop.f32.mrb[0].mxu0
        %v1561 = vadd.f32 %v1462, %v1560
        %1562 = vmatprep.mubr.f32.mxu0 0.0
        %1563 = vmatmul.mubr.f32.gmra.mrb[0].mxu0 %v1478
        %v1564 = vpop.f32.mrb[0].mxu0
        %v1565 = vadd.f32 %v1466, %v1564
        %v1566 = vpop.f32.mrb[0].mxu0
        %v1567 = vadd.f32 %v1466, %v1566
        %1568 = vdwg.mxu0
        %v1569 = vmul.f32 %v1547, 0.5
        %v1570 = vmul.f32 %v1549, 0.5
        %v1571 = vmul.f32 %v1553, 0.5
        %v1572 = vmul.f32 %v1555, 0.5
        %v1573 = vmul.f32 %v1559, 0.5
        %v1574 = vmul.f32 %v1561, 0.5
        %v1575 = vmul.f32 %v1565, 0.5
        %v1576 = vmul.f32 %v1567, 0.5
        %v1577 = vmul.f32 %v1547, 0.044715
        %v1578 = vmul.f32 %v1549, 0.044715
        %v1579 = vmul.f32 %v1553, 0.044715
        %v1580 = vmul.f32 %v1555, 0.044715
        %v1581 = vmul.f32 %v1559, 0.044715
        %v1582 = vmul.f32 %v1561, 0.044715
        %v1583 = vmul.f32 %v1565, 0.044715
        %v1584 = vmul.f32 %v1567, 0.044715
        %v1585 = vmul.f32 %v1577, %v1547
        %v1586 = vmul.f32 %v1578, %v1549
        %v1587 = vmul.f32 %v1579, %v1553
        %v1588 = vmul.f32 %v1580, %v1555
        %v1589 = vmul.f32 %v1581, %v1559
        %v1590 = vmul.f32 %v1582, %v1561
        %v1591 = vmul.f32 %v1583, %v1565
        %v1592 = vmul.f32 %v1584, %v1567
        %v1593 = vmul.f32 %v1585, %v1547
        %v1594 = vmul.f32 %v1586, %v1549
        %v1595 = vmul.f32 %v1587, %v1553
        %v1596 = vmul.f32 %v1588, %v1555
        %v1597 = vmul.f32 %v1589, %v1559
        %v1598 = vmul.f32 %v1590, %v1561
        %v1599 = vmul.f32 %v1591, %v1565
        %v1600 = vmul.f32 %v1592, %v1567
        %v1601 = vadd.f32 %v1547, %v1593
        %v1602 = vadd.f32 %v1549, %v1594
        %v1603 = vadd.f32 %v1553, %v1595
        %v1604 = vadd.f32 %v1555, %v1596
        %v1605 = vadd.f32 %v1559, %v1597
        %v1606 = vadd.f32 %v1561, %v1598
        %v1607 = vadd.f32 %v1565, %v1599
        %v1608 = vadd.f32 %v1567, %v1600
        %v1609 = vmul.f32 %v1601, 0.7978846
        %v1610 = vmul.f32 %v1602, 0.7978846
        %v1611 = vmul.f32 %v1603, 0.7978846
        %v1612 = vmul.f32 %v1604, 0.7978846
        %v1613 = vmul.f32 %v1605, 0.7978846
        %v1614 = vmul.f32 %v1606, 0.7978846
        %v1615 = vmul.f32 %v1607, 0.7978846
        %v1616 = vmul.f32 %v1608, 0.7978846
        %v1617 = vtanh.pop %v1609
        %v1618 = vtanh.pop %v1610
        %v1619 = vtanh.pop %v1611
        %v1620 = vtanh.pop %v1612
        %v1621 = vtanh.pop %v1613
        %v1622 = vtanh.pop %v1614
        %v1623 = vtanh.pop %v1615
        %v1624 = vtanh.pop %v1616
        %v1625 = vadd.f32 %v1617, 1.0
        %v1626 = vadd.f32 %v1618, 1.0
        %v1627 = vadd.f32 %v1619, 1.0
        %v1628 = vadd.f32 %v1620, 1.0
        %v1629 = vadd.f32 %v1621, 1.0
        %v1630 = vadd.f32 %v1622, 1.0
        %v1631 = vadd.f32 %v1623, 1.0
        %v1632 = vadd.f32 %v1624, 1.0
        %v1633 = vmul.f32 %v1569, %v1625
        %v1634 = vmul.f32 %v1570, %v1626
        %v1635 = vmul.f32 %v1571, %v1627
        %v1636 = vmul.f32 %v1572, %v1628
        %v1637 = vmul.f32 %v1573, %v1629
        %v1638 = vmul.f32 %v1574, %v1630
        %v1639 = vmul.f32 %v1575, %v1631
        %v1640 = vmul.f32 %v1576, %v1632
        %v1642 = vsel %vm320, %v185, 0
        %v1645 = vsel %vm320, %v186, 0
        %v1648 = vsel %vm320, %v187, 0
        %v1651 = vsel %vm320, %v188, 0
        %1653 = vmatprep.subr.mxu0 %v1634
        %1654 = vmatpush1.msra.mxu0 %v1633
        %1655 = vmatprep.subr.mxu0 %v1636
        %1656 = vmatpush1.msra.mxu0 %v1635
        %1657 = vmatprep.subr.mxu0 %v1638
        %1658 = vmatpush1.msra.mxu0 %v1637
        %1659 = vmatprep.subr.mxu0 %v1640
        %1660 = vmatpush1.msra.mxu0 %v1639
        %1661 = vmatprep.subr.mxu0 0.0
        %1662 = vmatpush1.msra.mxu0 0.0
        %1663 = vmatprep.subr.mxu0 0.0
        %1664 = vmatpush1.msra.mxu0 0.0
        %1665 = vmatprep.subr.mxu0 0.0
        %1666 = vmatpush1.msra.mxu0 0.0
        %1667 = vmatprep.subr.mxu0 0.0
        %1668 = vmatpush1.msra.mxu0 0.0
        %1669 = vmatprep.subr.mxu0 0.0
        %1670 = vmatpush1.msra.mxu0 0.0
        %1671 = vmatprep.subr.mxu0 0.0
        %1672 = vmatpush1.msra.mxu0 0.0
        %1673 = vmatprep.subr.mxu0 0.0
        %1674 = vmatpush1.msra.mxu0 0.0
        %1675 = vmatprep.subr.mxu0 0.0
        %1676 = vmatpush1.msra.mxu0 0.0
        %1677 = vmatprep.subr.mxu0 0.0
        %1678 = vmatpush1.msra.mxu0 0.0
        %1679 = vmatprep.subr.mxu0 0.0
        %1680 = vmatpush1.msra.mxu0 0.0
        %1681 = vmatprep.subr.mxu0 0.0
        %1682 = vmatpush1.msra.mxu0 0.0
        %1683 = vmatprep.subr.mxu0 0.0
        %1684 = vmatpush1.msra.mxu0 0.0
        %1685 = vmatprep.subr.mxu0 0.0
        %1686 = vmatpush1.msra.mxu0 0.0
        %1687 = vmatprep.subr.mxu0 0.0
        %1688 = vmatpush1.msra.mxu0 0.0
        %1689 = vmatprep.subr.mxu0 0.0
        %1690 = vmatpush1.msra.mxu0 0.0
        %1691 = vmatprep.subr.mxu0 0.0
        %1692 = vmatpush1.msra.mxu0 0.0
        %1693 = vmatprep.subr.mxu0 0.0
        %1694 = vmatpush1.msra.mxu0 0.0
        %1695 = vmatprep.subr.mxu0 0.0
        %1696 = vmatpush1.msra.mxu0 0.0
        %1697 = vmatprep.subr.mxu0 0.0
        %1698 = vmatpush1.msra.mxu0 0.0
        %1699 = vmatprep.subr.mxu0 0.0
        %1700 = vmatpush1.msra.mxu0 0.0
        %1701 = vmatprep.subr.mxu0 0.0
        %1702 = vmatpush1.msra.mxu0 0.0
        %1703 = vmatprep.subr.mxu0 0.0
        %1704 = vmatpush1.msra.mxu0 0.0
        %1705 = vmatprep.subr.mxu0 0.0
        %1706 = vmatpush1.msra.mxu0 0.0
        %1707 = vmatprep.subr.mxu0 0.0
        %1708 = vmatpush1.msra.mxu0 0.0
        %1709 = vmatprep.subr.mxu0 0.0
        %1710 = vmatpush1.msra.mxu0 0.0
        %1711 = vmatprep.subr.mxu0 0.0
        %1712 = vmatpush1.msra.mxu0 0.0
        %1713 = vmatprep.subr.mxu0 0.0
        %1714 = vmatpush1.msra.mxu0 0.0
        %1715 = vmatprep.subr.mxu0 0.0
        %1716 = vmatpush1.msra.mxu0 0.0
        %1717 = vmatprep.mubr.f32.mxu0 0.0
        %1718 = vmatmul.mubr.f32.gmra.mrb[0].mxu0 %v1642
        %v1719 = vpop.f32.mrb[0].mxu0
        %v1720 = vadd.f32 0.0, %v1719
        %v1721 = vpop.f32.mrb[0].mxu0
        %v1722 = vadd.f32 0.0, %v1721
        %1723 = vmatprep.mubr.f32.mxu0 0.0
        %1724 = vmatmul.mubr.f32.gmra.mrb[0].mxu0 %v1645
        %v1725 = vpop.f32.mrb[0].mxu0
        %v1726 = vadd.f32 0.0, %v1725
        %v1727 = vpop.f32.mrb[0].mxu0
        %v1728 = vadd.f32 0.0, %v1727
        %1729 = vmatprep.mubr.f32.mxu0 0.0
        %1730 = vmatmul.mubr.f32.gmra.mrb[0].mxu0 %v1648
        %v1731 = vpop.f32.mrb[0].mxu0
        %v1732 = vadd.f32 0.0, %v1731
        %v1733 = vpop.f32.mrb[0].mxu0
        %v1734 = vadd.f32 0.0, %v1733
        %1735 = vmatprep.mubr.f32.mxu0 0.0
        %1736 = vmatmul.mubr.f32.gmra.mrb[0].mxu0 %v1651
        %v1737 = vpop.f32.mrb[0].mxu0
        %v1738 = vadd.f32 0.0, %v1737
        %v1739 = vpop.f32.mrb[0].mxu0
        %v1740 = vadd.f32 0.0, %v1739
        %1741 = vdwg.mxu0
        %v1742 = vadd.f32 %v1380, %v1720
        %v1743 = vadd.f32 %v1381, %v1722
        %v1744 = vadd.f32 %v1382, %v1726
        %v1745 = vadd.f32 %v1383, %v1728
        %v1746 = vadd.f32 %v1384, %v1732
        %v1747 = vadd.f32 %v1385, %v1734
        %v1748 = vadd.f32 %v1386, %v1738
        %v1749 = vadd.f32 %v1387, %v1740
        %1750 = vset.pattern.permute.xlu0 14
        %1751 = vperm.xlu0 %1750, %v189
        %v1752 = vpop.permute.xlu0 %1751
        %1754 = vset.pattern.permute.xlu0 14
        %1755 = vperm.xlu0 %1754, %v190
        %v1756 = vpop.permute.xlu0 %1755
        %1758 = vset.pattern.permute.xlu0 14
        %1759 = vperm.xlu0 %1758, %v191
        %v1760 = vpop.permute.xlu0 %1759
        %1762 = vset.pattern.permute.xlu0 14
        %1763 = vperm.xlu0 %1762, %v192
        %v1764 = vpop.permute.xlu0 %1763
        %v1766 = vadd.f32 %v1742, %v1752
        %v1767 = vadd.f32 %v1743, %v1752
        %v1768 = vadd.f32 %v1744, %v1756
        %v1769 = vadd.f32 %v1745, %v1756
        %v1770 = vadd.f32 %v1746, %v1760
        %v1771 = vadd.f32 %v1747, %v1760
        %v1772 = vadd.f32 %v1748, %v1764
        %v1773 = vadd.f32 %v1749, %v1764
        %1774 = vst [vmem:[%s163] sm:$0xff] %v1766
        %1775 = vst [vmem:[%s163 + $0x8] sm:$0xff] %v1767
        %1776 = vst [vmem:[%s163 + $0x10] sm:$0xff] %v1768
        %1777 = vst [vmem:[%s163 + $0x18] sm:$0xff] %v1769
        %1778 = vst [vmem:[%s163 + $0x20] sm:$0xff] %v1770
        %1779 = vst [vmem:[%s163 + $0x28] sm:$0xff] %v1771
        %1780 = vst [vmem:[%s163 + $0x30] sm:$0xff] %v1772
        %1781 = vst [vmem:[%s163 + $0x38] sm:$0xff] %v1773
        %s1782 = sand.u32 %s93, 1
        %s1783 = scalar_lea.sflag [#allocation3], %s1782
        %s1784 = sand.u32 %s93, 1
        %s1785 = smul.addr %s1784, 64
        %s1786 = scalar_lea.vmem [#allocation2], %s1785
        // Predicated region
        $region33: #{tpu_custom_call.1} parent=31 // pred_check
          %p1787 = pneg %p103
        $region34: #{tpu_custom_call.1} parent=31 // pred_check_branch
          %1789 = sbr.rel (%p1787) target = $region36
        $region35: #{tpu_custom_call.1} parent=31 // pred_region
          %s1791 = ssub.s32 1024, 1024
          %1792 = vsyncadd %s1783, %s1791
          %s1793 = smul.addr %s17, 8
          %s1794 = smul.addr %s1793, 128
          %s1795 = scalar_lea.hbm %s3, %s1794
          %s1796 = sshll.u32 %s1786, 4
          %s1797 = int_to_ptr.vmem [resolvable:$true] %s1796
          %1802 = dma.vmem_to_hbm [thread:$0]  %s1797, 1024, %s1795, %s1783, 256, 256, 16
        $region36: #{tpu_custom_call.1} parent=31 // pred_fallthru
          _
      $region32: #{tpu_custom_call.1} parent=5 // pred_fallthru
        _
      %p1803 = scmp.le.s32.totalorder 2, %s12
      // Predicated region
      $region37: #{tpu_custom_call.1} parent=5 // pred_check
        %p1804 = pneg %p1803
      $region38: #{tpu_custom_call.1} parent=5 // pred_check_branch
        %1806 = sbr.rel (%p1804) target = $region40
      $region39: #{tpu_custom_call.1} parent=5 // pred_region
        %s1807 = ssub.s32 %s12, 2
        // Predicated region
        $region41: #{tpu_custom_call.1} parent=39 // pred_check
          %p1808 = pneg %p109
        $region42: #{tpu_custom_call.1} parent=39 // pred_check_branch
          %1810 = sbr.rel (%p1808) target = $region44
        $region43: #{tpu_custom_call.1} parent=39 // pred_region
          %s1811 = sand.u32 %s94, 1
          %s1812 = scalar_lea.sflag [#allocation3], %s1811
          %s1813 = sand.u32 %s94, 1
          %s1814 = smul.addr %s1813, 64
          %s1815 = scalar_lea.vmem [#allocation2], %s1814
          %1816 = dma.done %s1812, 1024
        $region44: #{tpu_custom_call.1} parent=39 // pred_fallthru
          _
      $region40: #{tpu_custom_call.1} parent=5 // pred_fallthru
        _
    $region6: #{tpu_custom_call.1} parent=1 // loop_footer
      %s16 = sadd.s32 1, %s12
    $region7: #{tpu_custom_call.1} parent=1 // loop_footer_branch
      %11 = sbr.rel target = $region3
    $region8: #{tpu_custom_call.1} parent=1 // loop_exit
      _
    %1817 = vsyncpa [#allocation3], 1
    %s1818 = scalar_lea.sflag [#allocation3], 1
    %1819 = vsyncpa %s1818, 1

</llo_original>
